<compile_context>
chip_gen: v7x
topology: tpu7x:2x2x1
jax: 0.10.0
libtpu: 0.0.40
codegen_flags: <defaults>
</compile_context>

<pallas_src>
import jax
import jax.numpy as jnp
from jax.experimental import pallas as pl
from jax.experimental.pallas import tpu as pltpu

IN_FEATURES = 1280
OUT_FEATURES = 1280
TILE_N = 640   # 2 output-feature blocks -> one per TensorCore on v7x


def linear_kernel(x_ref, w_ref, b_ref, o_ref):
    """One N-block of y = x @ W_t + b (full K reduction in one MXU dot).

    x_ref: (M_pad, 1280) bf16   activations (full K)
    w_ref: (1280, TILE_N) bf16  slab of W^T ([in_features, out_features])
    b_ref: (1, TILE_N) f32      bias slab
    o_ref: (M_pad, TILE_N) f32  output slab
    """
    o_ref[...] = (
        jnp.dot(x_ref[...], w_ref[...], preferred_element_type=jnp.float32)
        + b_ref[...]
    ).astype(o_ref.dtype)


def multi_embedding_pallas(feat, w_t_bf16, bias):
    """feat: [B, 1280] f32, w_t_bf16: [1280, 1280] bf16 (in, out), bias: [1280] f32."""
    B, K = feat.shape
    N = w_t_bf16.shape[1]
    assert K == IN_FEATURES and N == OUT_FEATURES
    assert N % TILE_N == 0

    # Pad batch to a multiple of 8 (f32 sublane) to avoid masked partial stores.
    M_pad = max(8, ((B + 7) // 8) * 8)
    if M_pad != B:
        feat = jnp.pad(feat, ((0, M_pad - B), (0, 0)))
    feat_bf16 = feat.astype(jnp.bfloat16)
    b2 = bias.reshape(1, N)

    grid = (N // TILE_N,)  # 2 independent output blocks

    out = pl.pallas_call(
        linear_kernel,
        out_shape=jax.ShapeDtypeStruct((M_pad, N), jnp.float32),
        grid_spec=pltpu.PrefetchScalarGridSpec(
            num_scalar_prefetch=0,
            grid=grid,
            in_specs=[
                pl.BlockSpec((M_pad, K), lambda j: (0, 0)),      # activations (full K)
                pl.BlockSpec((K, TILE_N), lambda j: (0, j)),     # W^T slab
                pl.BlockSpec((1, TILE_N), lambda j: (0, j)),     # bias slab
            ],
            out_specs=pl.BlockSpec((M_pad, TILE_N), lambda j: (0, j)),
        ),
        compiler_params=pltpu.CompilerParams(
            dimension_semantics=("parallel",)
        ),
    )(feat_bf16, w_t_bf16, b2)
    return out[:B]


class MultiTaskModel:
    """JAX mirror of multi_task_model: backbone -> Linear(1280, 1280)."""

    def __init__(self, key, in_channels):
        k_backbone, k_w, k_b = jax.random.split(key, 3)

        # Stand-in for mobile_netv2: GAP over H,W then fixed projection
        # C -> 1280 (deterministic, not trained).
        self.backbone_proj = (
            jax.random.normal(k_backbone, (in_channels, IN_FEATURES), jnp.float32)
            * (1.0 / jnp.sqrt(in_channels))
        )

        # multi_embedding = nn.Linear(1280, 1280), Xavier-normal weight.
        xavier_std = jnp.sqrt(2.0 / (IN_FEATURES + OUT_FEATURES))
        emb_weight = (
            jax.random.normal(k_w, (OUT_FEATURES, IN_FEATURES), jnp.float32)
            * xavier_std
        )
        # Hoisted to init: store pre-transposed ([in, out]) and pre-cast to bf16
        # so the kernel streams it directly (no per-forward transpose / cast).
        self.emb_weight_t = emb_weight.T.astype(jnp.bfloat16)   # [in, out] bf16

        # PyTorch Linear default bias init: U(-1/sqrt(fan_in), 1/sqrt(fan_in)).
        bound = 1.0 / jnp.sqrt(IN_FEATURES)
        self.emb_bias = jax.random.uniform(
            k_b, (OUT_FEATURES,), jnp.float32, minval=-bound, maxval=bound
        )

        self.learnt_embedding = None

    def backbone(self, x):
        # x: [B, C, H, W] (NCHW) -> [B, 1280]
        pooled = jnp.mean(x, axis=(2, 3))          # [B, C]
        return pooled @ self.backbone_proj         # [B, 1280]

    def forward(self, x, target="rotation"):
        x1 = self.backbone(x)                                   # mobile_netv2(x)
        x1 = multi_embedding_pallas(x1, self.emb_weight_t, self.emb_bias)
        self.learnt_embedding = x1
        return x1

    def get_embedding(self):
        return self.learnt_embedding


if __name__ == "__main__":
    key = jax.random.PRNGKey(0)
    k_model, k_x = jax.random.split(key)

    B, C, H, W = 2, 4, 16, 16
    x = jax.random.normal(k_x, (B, C, H, W), jnp.float32)

    model = MultiTaskModel(k_model, in_channels=C)
    out = model.forward(x)
    out = jax.block_until_ready(out)

    # Sanity check against a plain-JAX reference of the embedding Linear
    # (same bf16 operand rounding, f32 accumulation).
    feat = model.backbone(x)
    ref = (
        feat.astype(jnp.bfloat16).astype(jnp.float32)
        @ model.emb_weight_t.astype(jnp.float32)
        + model.emb_bias
    )
    assert out.shape == (B, OUT_FEATURES)
    assert jnp.allclose(out, ref, atol=1e-3, rtol=1e-3)
    assert model.get_embedding() is out

    print("KERNEL_OK")
</pallas_src>

<mosaic_0001>
module attributes {stable_mosaic.version = 11 : i64} {
  func.func @linear_kernel(%arg0: i32, %arg1: memref<8x1280xbf16, #tpu.memory_space<vmem>>, %arg2: memref<1280x640xbf16, #tpu.memory_space<vmem>>, %arg3: memref<1x640xf32, #tpu.memory_space<vmem>>, %arg4: memref<8x640xf32, #tpu.memory_space<vmem>>) attributes {dimension_semantics = [#tpu.dimension_semantics<parallel>], iteration_bounds = array<i64: 2>, scalar_prefetch = 0 : i64, scratch_operands = 0 : i64, tpu.core_type = #tpu.core_type<tc>, window_params = [{pipeline_mode = #tpu.pipeline_mode<synchronous>, transform_indices = @transform_0, window_bounds = array<i64: 8, 1280>}, {transform_indices = @transform_1, window_bounds = array<i64: 1280, 640>}, {transform_indices = @transform_2, window_bounds = array<i64: 1, 640>}, {transform_indices = @transform_3, window_bounds = array<i64: 8, 640>}]} {
    %c0 = arith.constant 0 : index
    %c0_0 = arith.constant 0 : index
    %0 = vector.load %arg1[%c0, %c0_0] : memref<8x1280xbf16, #tpu.memory_space<vmem>>, vector<8x1280xbf16>
    %c0_1 = arith.constant 0 : index
    %c0_2 = arith.constant 0 : index
    %1 = vector.load %arg2[%c0_1, %c0_2] : memref<1280x640xbf16, #tpu.memory_space<vmem>>, vector<1280x640xbf16>
    %cst = arith.constant dense<0.000000e+00> : vector<8x640xf32>
    %2 = tpu.matmul %0, %1, %cst {dimension_numbers = #tpu.dot_dimension_numbers<[1], [0], [0], [1], [0, 0, 1, 1], [], []>} : vector<8x1280xbf16>, vector<1280x640xbf16>, vector<8x640xf32> -> vector<8x640xf32>
    %c0_3 = arith.constant 0 : index
    %c0_4 = arith.constant 0 : index
    %3 = vector.load %arg3[%c0_3, %c0_4] : memref<1x640xf32, #tpu.memory_space<vmem>>, vector<1x640xf32>
    %4 = vector.broadcast %3 : vector<1x640xf32> to vector<8x640xf32>
    %5 = arith.addf %2, %4 : vector<8x640xf32>
    %c0_5 = arith.constant 0 : index
    %c0_6 = arith.constant 0 : index
    %6 = vector.load %arg4[%c0_5, %c0_6] : memref<8x640xf32, #tpu.memory_space<vmem>>, vector<8x640xf32>
    tpu.vector_store %arg4[%c0_5, %c0_6], %5 {strides = array<i32>} : memref<8x640xf32, #tpu.memory_space<vmem>>, vector<8x640xf32>,
    return
  }
  func.func @transform_0(%arg0: i32) -> (i32, i32) {
    %c0_i32 = arith.constant 0 : i32
    %c0_i32_0 = arith.constant 0 : i32
    %c0_i32_1 = arith.constant 0 : i32
    return %c0_i32, %c0_i32_0 : i32, i32
  }
  func.func @transform_1(%arg0: i32) -> (i32, i32) {
    %c0_i32 = arith.constant 0 : i32
    %c0_i32_0 = arith.constant 0 : i32
    return %c0_i32, %arg0 : i32, i32
  }
  func.func @transform_2(%arg0: i32) -> (i32, i32) {
    %c0_i32 = arith.constant 0 : i32
    %c0_i32_0 = arith.constant 0 : i32
    return %c0_i32, %arg0 : i32, i32
  }
  func.func @transform_3(%arg0: i32) -> (i32, i32) {
    %c0_i32 = arith.constant 0 : i32
    %c0_i32_0 = arith.constant 0 : i32
    return %c0_i32, %arg0 : i32, i32
  }
}

</mosaic_0001>

<llo_original>
// kernel: tpu_custom_call.1
$region0: #{tpu_custom_call.1}
  #allocation0 [shape = 'u32[]', space=smem, size = 0x4, offset = 0x4, fixed_abs, tag = 'smem constant byte address 0x4 - core index']
  #allocation1 [shape = 'u32[144,128]{1,0:T(1,128)}', space=vmem, size = 0x12000, scoped, tag = 'internal scratch']
  %s0 = inlined_call_operand.hbm [shape: bf16[8,1280], index: 0, kind: input, shape index: {}]
  %s1 = inlined_call_operand.hbm [shape: bf16[1280,1280], index: 1, kind: input, shape index: {}]
  %s2 = inlined_call_operand.hbm [shape: f32[1,1280], index: 2, kind: input, shape index: {}]
  %s3 = inlined_call_operand.hbm [shape: f32[8,1280], index: 3, kind: output, shape index: {}]
  %s4 = sld [smem:[#allocation0]]
  $region57: #{tpu_custom_call.1} parent=0
    _
  %s6 = ssub.s32 1, %s4
  %s7 = scalar_select 0, %s6, %s4
  $region1: #{tpu_custom_call.1} parent=0
    #allocation2 [shape = 'u8[20480]{0}', space=vmem, size = 0x5000, scoped, tag = 'input window, operand 0, single buffered']
    #allocation3 [shape = 's32[2]{0}', space=sflag, size = 0x8, scoped, tag = 'scoped memory for tpu_custom_call.1']
    #allocation4 [shape = 's32[2]{0}', space=sflag, size = 0x8, scoped, tag = 'scoped memory for tpu_custom_call.1']
    #allocation5 [shape = 'u8[3276800]{0}', space=vmem, size = 0x320000, scoped, tag = 'input window, operand 1']
    #allocation6 [shape = 's32[2]{0}', space=sflag, size = 0x8, scoped, tag = 'scoped memory for tpu_custom_call.1']
    #allocation7 [shape = 'u8[5120]{0}', space=vmem, size = 0x1400, scoped, tag = 'input window, operand 2']
    #allocation8 [shape = 'u8[40960]{0}', space=vmem, size = 0xa000, scoped, tag = 'output window, operand 0']
    %8 = vsyncpa [#allocation3], 0
    %9 = vsyncpa [#allocation6], 0
    %s10 = scalar_lea.sflag [#allocation6], 1
    %11 = vsyncpa %s10, 0
    %12 = vsyncpa [#allocation4], 0
    %s13 = scalar_lea.sflag [#allocation4], 1
    %14 = vsyncpa %s13, 0
    loop: start=0, step=1, limit=4
    $region2: #{tpu_custom_call.1} parent=1 // loop_pre_header
      _
    $region3: #{tpu_custom_call.1} parent=1 // loop_header
      %s16 = sphi 0, %s20
      %p17 = scmp.ge.s32.totalorder %s16, 4
      %s24 = sphi 0, %s24
      %s26 = sphi 0, %s24
      %s27 = sphi 0, %s26
      %s41 = sphi 0, %s27
      %s47 = sphi 0, %s49
      %s50 = sphi 0, %s47
      %s51 = sphi 0, %s50
      %s67 = sphi 0, %s51
      %s73 = sphi 0, %s75
      %s76 = sphi 0, %s73
      %s77 = sphi 0, %s76
      %s93 = sphi 0, %s77
      %s99 = sphi 0, %s101
      %s102 = sphi 0, %s99
      %s103 = sphi 0, %s102
      %s119 = sphi 0, %s103
    $region4: #{tpu_custom_call.1} parent=1 // loop_header_branch
      %19 = sbr.rel (%p17) target = $region8
    $region5: #{tpu_custom_call.1} parent=1 // loop_body
      %s21 = ssub.s32 %s16, 1
      %s22 = ssub.s32 %s16, 2
      %s23 = sadd.s32 %s16, 1
      %s25 = sadd.s32 %s24, 1
      %p28 = scmp.eq.s32.totalorder %s16, 1
      %p29 = scmp.ne.s32.totalorder %s24, %s26
      %p30 = scmp.eq.s32.totalorder %s16, 0
      %p31 = por %p29, %p30
      %p32 = scmp.ne.s32.totalorder %s24, %s26
      %p33 = scmp.eq.s32.totalorder %s21, 1
      %p34 = por %p32, %p33
      %p35 = scmp.ne.s32.totalorder %s26, %s27
      %p36 = scmp.eq.s32.totalorder %s21, 0
      %p37 = por %p35, %p36
      %p38 = scmp.ne.s32.totalorder %s26, %s27
      %p39 = scmp.eq.s32.totalorder %s22, 1
      %p40 = por %p38, %p39
      %p42 = scmp.ne.s32.totalorder %s27, %s41
      %p43 = scmp.eq.s32.totalorder %s22, 0
      %p44 = por %p42, %p43
      %s45 = ssub.s32 %s16, %s23
      %p46 = scmp.eq.s32.totalorder %s45, 0
      %s48 = sadd.s32 %s47, 1
      %s49 = scalar_select %p46, %s47, %s48
      %p52 = pneg %p46
      %p53 = scmp.eq.s32.totalorder %s16, 1
      %p54 = por %p52, %p53
      %p55 = scmp.ne.s32.totalorder %s47, %s50
      %p56 = scmp.eq.s32.totalorder %s16, 0
      %p57 = por %p55, %p56
      %p58 = scmp.ne.s32.totalorder %s47, %s50
      %p59 = scmp.eq.s32.totalorder %s21, 1
      %p60 = por %p58, %p59
      %p61 = scmp.ne.s32.totalorder %s50, %s51
      %p62 = scmp.eq.s32.totalorder %s21, 0
      %p63 = por %p61, %p62
      %p64 = scmp.ne.s32.totalorder %s50, %s51
      %p65 = scmp.eq.s32.totalorder %s22, 1
      %p66 = por %p64, %p65
      %p68 = scmp.ne.s32.totalorder %s51, %s67
      %p69 = scmp.eq.s32.totalorder %s22, 0
      %p70 = por %p68, %p69
      %s71 = ssub.s32 %s16, %s23
      %p72 = scmp.eq.s32.totalorder %s71, 0
      %s74 = sadd.s32 %s73, 1
      %s75 = scalar_select %p72, %s73, %s74
      %p78 = pneg %p72
      %p79 = scmp.eq.s32.totalorder %s16, 1
      %p80 = por %p78, %p79
      %p81 = scmp.ne.s32.totalorder %s73, %s76
      %p82 = scmp.eq.s32.totalorder %s16, 0
      %p83 = por %p81, %p82
      %p84 = scmp.ne.s32.totalorder %s73, %s76
      %p85 = scmp.eq.s32.totalorder %s21, 1
      %p86 = por %p84, %p85
      %p87 = scmp.ne.s32.totalorder %s76, %s77
      %p88 = scmp.eq.s32.totalorder %s21, 0
      %p89 = por %p87, %p88
      %p90 = scmp.ne.s32.totalorder %s76, %s77
      %p91 = scmp.eq.s32.totalorder %s22, 1
      %p92 = por %p90, %p91
      %p94 = scmp.ne.s32.totalorder %s77, %s93
      %p95 = scmp.eq.s32.totalorder %s22, 0
      %p96 = por %p94, %p95
      %s97 = ssub.s32 %s16, %s23
      %p98 = scmp.eq.s32.totalorder %s97, 0
      %s100 = sadd.s32 %s99, 1
      %s101 = scalar_select %p98, %s99, %s100
      %p104 = pneg %p98
      %p105 = scmp.eq.s32.totalorder %s16, 1
      %p106 = por %p104, %p105
      %p107 = scmp.ne.s32.totalorder %s99, %s102
      %p108 = scmp.eq.s32.totalorder %s16, 0
      %p109 = por %p107, %p108
      %p110 = scmp.ne.s32.totalorder %s99, %s102
      %p111 = scmp.eq.s32.totalorder %s21, 1
      %p112 = por %p110, %p111
      %p113 = scmp.ne.s32.totalorder %s102, %s103
      %p114 = scmp.eq.s32.totalorder %s21, 0
      %p115 = por %p113, %p114
      %p116 = scmp.ne.s32.totalorder %s102, %s103
      %p117 = scmp.eq.s32.totalorder %s22, 1
      %p118 = por %p116, %p117
      %p120 = scmp.ne.s32.totalorder %s103, %s119
      %p121 = scmp.eq.s32.totalorder %s22, 0
      %p122 = por %p120, %p121
      %p123 = scmp.le.s32.totalorder 1, %s16
      %p124 = scmp.lt.s32.totalorder %s16, 3
      %p125 = pnand %p123, %p124
      %p126 = pneg %p125
      // Predicated region
      $region9: #{tpu_custom_call.1} parent=5 // pred_check
        _
      $region10: #{tpu_custom_call.1} parent=5 // pred_check_branch
        %128 = sbr.rel (%p125) target = $region12
      $region11: #{tpu_custom_call.1} parent=5 // pred_region
        %s129 = ssub.s32 %s16, 1
        // Predicated region
        $region13: #{tpu_custom_call.1} parent=11 // pred_check
          %p130 = pneg %p37
        $region14: #{tpu_custom_call.1} parent=11 // pred_check_branch
          %132 = sbr.rel (%p130) target = $region16
        $region15: #{tpu_custom_call.1} parent=11 // pred_region
          %s134 = ssub.s32 640, 640
          %135 = vsyncadd [#allocation3], %s134
          %s137 = sshll.u32 [#allocation2], 4
          %s138 = int_to_ptr.vmem [resolvable:$true] %s137
          %140 = dma.hbm_to_vmem [thread:$0]  %s0, 640, %s138, [#allocation3]
        $region16: #{tpu_custom_call.1} parent=11 // pred_fallthru
          _
      $region12: #{tpu_custom_call.1} parent=5 // pred_fallthru
        _
      %p141 = scmp.lt.s32.totalorder %s16, 2
      // Predicated region
      $region17: #{tpu_custom_call.1} parent=5 // pred_check
        %p142 = pneg %p141
      $region18: #{tpu_custom_call.1} parent=5 // pred_check_branch
        %144 = sbr.rel (%p142) target = $region20
      $region19: #{tpu_custom_call.1} parent=5 // pred_region
        // Predicated region
        $region21: #{tpu_custom_call.1} parent=19 // pred_check
          %p145 = pneg %p57
        $region22: #{tpu_custom_call.1} parent=19 // pred_check_branch
          %147 = sbr.rel (%p145) target = $region24
        $region23: #{tpu_custom_call.1} parent=19 // pred_region
          %s148 = sand.u32 %s16, 1
          %s149 = scalar_lea.sflag [#allocation6], %s148
          %s150 = sand.u32 %s47, 1
          %s151 = smul.addr %s150, 3200
          %s152 = scalar_lea.vmem [#allocation5], %s151
          %s153 = smul.u32 5, %s16
          %s155 = ssub.s32 51200, 51200
          %156 = vsyncadd %s149, %s155
          %s157 = smul.addr %s153, 64
          %s158 = scalar_lea.hbm %s1, %s157
          %s159 = sshll.u32 %s152, 4
          %s160 = int_to_ptr.vmem [resolvable:$true] %s159
          %165 = dma.hbm_to_vmem [thread:$0]  %s158, 51200, %s160, %s149, 640, 320, 20
        $region24: #{tpu_custom_call.1} parent=19 // pred_fallthru
          _
        // Predicated region
        $region25: #{tpu_custom_call.1} parent=19 // pred_check
          %p166 = pneg %p83
        $region26: #{tpu_custom_call.1} parent=19 // pred_check_branch
          %168 = sbr.rel (%p166) target = $region28
        $region27: #{tpu_custom_call.1} parent=19 // pred_region
          %s169 = sand.u32 %s16, 1
          %s170 = scalar_lea.sflag [#allocation6], %s169
          %s171 = sand.u32 %s73, 1
          %s172 = smul.addr %s171, 5
          %s173 = scalar_lea.vmem [#allocation7], %s172
          %s174 = smul.u32 5, %s16
          %s176 = ssub.s32 80, 80
          %177 = vsyncadd %s170, %s176
          %s178 = smul.addr %s174, 16
          %s179 = scalar_lea.hbm %s2, %s178
          %s181 = sshll.u32 %s173, 4
          %s182 = int_to_ptr.vmem [resolvable:$true] %s181
          %184 = dma.hbm_to_vmem [thread:$0]  %s179, 80, %s182, %s170
        $region28: #{tpu_custom_call.1} parent=19 // pred_fallthru
          _
      $region20: #{tpu_custom_call.1} parent=5 // pred_fallthru
        _
      %p185 = scmp.le.s32.totalorder 1, %s16
      %p186 = scmp.lt.s32.totalorder %s16, 3
      %p187 = pnand %p185, %p186
      %p188 = pneg %p187
      // Predicated region
      $region29: #{tpu_custom_call.1} parent=5 // pred_check
        _
      $region30: #{tpu_custom_call.1} parent=5 // pred_check_branch
        %190 = sbr.rel (%p187) target = $region32
      $region31: #{tpu_custom_call.1} parent=5 // pred_region
        %s191 = ssub.s32 %s16, 1
        // Predicated region
        $region33: #{tpu_custom_call.1} parent=31 // pred_check
          %p192 = pneg %p37
        $region34: #{tpu_custom_call.1} parent=31 // pred_check_branch
          %194 = sbr.rel (%p192) target = $region36
        $region35: #{tpu_custom_call.1} parent=31 // pred_region
          %195 = dma.done [#allocation3], 640
        $region36: #{tpu_custom_call.1} parent=31 // pred_fallthru
          _
        %s196 = sand.u32 %s21, 1
        %s197 = scalar_lea.sflag [#allocation6], %s196
        %s198 = sand.u32 %s50, 1
        %s199 = smul.addr %s198, 3200
        %s200 = scalar_lea.vmem [#allocation5], %s199
        // Predicated region
        $region37: #{tpu_custom_call.1} parent=31 // pred_check
          %p201 = pneg %p63
        $region38: #{tpu_custom_call.1} parent=31 // pred_check_branch
          %203 = sbr.rel (%p201) target = $region40
        $region39: #{tpu_custom_call.1} parent=31 // pred_region
          %204 = dma.done %s197, 51200
        $region40: #{tpu_custom_call.1} parent=31 // pred_fallthru
          _
        %s205 = sand.u32 %s21, 1
        %s206 = scalar_lea.sflag [#allocation6], %s205
        %s207 = sand.u32 %s76, 1
        %s208 = smul.addr %s207, 5
        %s209 = scalar_lea.vmem [#allocation7], %s208
        // Predicated region
        $region41: #{tpu_custom_call.1} parent=31 // pred_check
          %p210 = pneg %p89
        $region42: #{tpu_custom_call.1} parent=31 // pred_check_branch
          %212 = sbr.rel (%p210) target = $region44
        $region43: #{tpu_custom_call.1} parent=31 // pred_region
          %213 = dma.done %s206, 80
        $region44: #{tpu_custom_call.1} parent=31 // pred_fallthru
          _
        %p214 = pneg %p37
        %p215 = pneg %p34
        %s216 = sand.u32 %s21, 1
        %s217 = scalar_lea.sflag [#allocation6], %s216
        %s218 = sand.u32 %s50, 1
        %s219 = smul.addr %s218, 3200
        %s220 = scalar_lea.vmem [#allocation5], %s219
        %p221 = pneg %p63
        %p222 = pneg %p60
        %s223 = sand.u32 %s21, 1
        %s224 = scalar_lea.sflag [#allocation6], %s223
        %s225 = sand.u32 %s76, 1
        %s226 = smul.addr %s225, 5
        %s227 = scalar_lea.vmem [#allocation7], %s226
        %p228 = pneg %p89
        %p229 = pneg %p86
        %p230 = pneg %p115
        %p231 = pneg %p112
        %s232 = sand.u32 %s102, 1
        %s233 = scalar_lea.sflag [#allocation4], %s232
        %s234 = sand.u32 %s102, 1
        %s235 = smul.addr %s234, 40
        %s236 = scalar_lea.vmem [#allocation8], %s235
        %s237 = smul.u32 5, %s21
        %s238 = smul.u32 5, %s21
        %s239 = smul.u32 5, %s21
        %v241 = vld [vmem:[#allocation2] sm:$0xff]
        %v242 = vld [vmem:[#allocation2 + $0x8] sm:$0xff]
        %v243 = vld [vmem:[#allocation2 + $0x10] sm:$0xff]
        %v244 = vld [vmem:[#allocation2 + $0x18] sm:$0xff]
        %v245 = vld [vmem:[#allocation2 + $0x20] sm:$0xff]
        %v246 = vld [vmem:[%s200] sm:$0xff]
        %v247 = vld [vmem:[%s200 + $0x8] sm:$0xff]
        %v248 = vld [vmem:[%s200 + $0x10] sm:$0xf]
        %v249 = vld [vmem:[%s200 + $0x14] sm:$0xff]
        %v250 = vld [vmem:[%s200 + $0x1c] sm:$0xff]
        %v251 = vld [vmem:[%s200 + $0x24] sm:$0xf]
        %v252 = vld [vmem:[%s200 + $0x28] sm:$0xff]
        %v253 = vld [vmem:[%s200 + $0x30] sm:$0xff]
        %v254 = vld [vmem:[%s200 + $0x38] sm:$0xf]
        %v255 = vld [vmem:[%s200 + $0x3c] sm:$0xff]
        %v256 = vld [vmem:[%s200 + $0x44] sm:$0xff]
        %v257 = vld [vmem:[%s200 + $0x4c] sm:$0xf]
        %v258 = vld [vmem:[%s200 + $0x50] sm:$0xff]
        %v259 = vld [vmem:[%s200 + $0x58] sm:$0xff]
        %v260 = vld [vmem:[%s200 + $0x60] sm:$0xf]
        %v261 = vld [vmem:[%s200 + $0x64] sm:$0xff]
        %v262 = vld [vmem:[%s200 + $0x6c] sm:$0xff]
        %v263 = vld [vmem:[%s200 + $0x74] sm:$0xf]
        %v264 = vld [vmem:[%s200 + $0x78] sm:$0xff]
        %v265 = vld [vmem:[%s200 + $0x80] sm:$0xff]
        %v266 = vld [vmem:[%s200 + $0x88] sm:$0xf]
        %v267 = vld [vmem:[%s200 + $0x8c] sm:$0xff]
        %v268 = vld [vmem:[%s200 + $0x94] sm:$0xff]
        %v269 = vld [vmem:[%s200 + $0x9c] sm:$0xf]
        %v270 = vld [vmem:[%s200 + $0xa0] sm:$0xff]
        %v271 = vld [vmem:[%s200 + $0xa8] sm:$0xff]
        %v272 = vld [vmem:[%s200 + $0xb0] sm:$0xf]
        %v273 = vld [vmem:[%s200 + $0xb4] sm:$0xff]
        %v274 = vld [vmem:[%s200 + $0xbc] sm:$0xff]
        %v275 = vld [vmem:[%s200 + $0xc4] sm:$0xf]
        %v276 = vld [vmem:[%s200 + $0xc8] sm:$0xff]
        %v277 = vld [vmem:[%s200 + $0xd0] sm:$0xff]
        %v278 = vld [vmem:[%s200 + $0xd8] sm:$0xf]
        %v279 = vld [vmem:[%s200 + $0xdc] sm:$0xff]
        %v280 = vld [vmem:[%s200 + $0xe4] sm:$0xff]
        %v281 = vld [vmem:[%s200 + $0xec] sm:$0xf]
        %v282 = vld [vmem:[%s200 + $0xf0] sm:$0xff]
        %v283 = vld [vmem:[%s200 + $0xf8] sm:$0xff]
        %v284 = vld [vmem:[%s200 + $0x100] sm:$0xf]
        %v285 = vld [vmem:[%s200 + $0x104] sm:$0xff]
        %v286 = vld [vmem:[%s200 + $0x10c] sm:$0xff]
        %v287 = vld [vmem:[%s200 + $0x114] sm:$0xf]
        %v288 = vld [vmem:[%s200 + $0x118] sm:$0xff]
        %v289 = vld [vmem:[%s200 + $0x120] sm:$0xff]
        %v290 = vld [vmem:[%s200 + $0x128] sm:$0xf]
        %v291 = vld [vmem:[%s200 + $0x12c] sm:$0xff]
        %v292 = vld [vmem:[%s200 + $0x134] sm:$0xff]
        %v293 = vld [vmem:[%s200 + $0x13c] sm:$0xf]
        %v294 = vld [vmem:[%s200 + $0x140] sm:$0xff]
        %v295 = vld [vmem:[%s200 + $0x148] sm:$0xff]
        %v296 = vld [vmem:[%s200 + $0x150] sm:$0xf]
        %v297 = vld [vmem:[%s200 + $0x154] sm:$0xff]
        %v298 = vld [vmem:[%s200 + $0x15c] sm:$0xff]
        %v299 = vld [vmem:[%s200 + $0x164] sm:$0xf]
        %v300 = vld [vmem:[%s200 + $0x168] sm:$0xff]
        %v301 = vld [vmem:[%s200 + $0x170] sm:$0xff]
        %v302 = vld [vmem:[%s200 + $0x178] sm:$0xf]
        %v303 = vld [vmem:[%s200 + $0x17c] sm:$0xff]
        %v304 = vld [vmem:[%s200 + $0x184] sm:$0xff]
        %v305 = vld [vmem:[%s200 + $0x18c] sm:$0xf]
        %v306 = vld [vmem:[%s200 + $0x190] sm:$0xff]
        %v307 = vld [vmem:[%s200 + $0x198] sm:$0xff]
        %v308 = vld [vmem:[%s200 + $0x1a0] sm:$0xf]
        %v309 = vld [vmem:[%s200 + $0x1a4] sm:$0xff]
        %v310 = vld [vmem:[%s200 + $0x1ac] sm:$0xff]
        %v311 = vld [vmem:[%s200 + $0x1b4] sm:$0xf]
        %v312 = vld [vmem:[%s200 + $0x1b8] sm:$0xff]
        %v313 = vld [vmem:[%s200 + $0x1c0] sm:$0xff]
        %v314 = vld [vmem:[%s200 + $0x1c8] sm:$0xf]
        %v315 = vld [vmem:[%s200 + $0x1cc] sm:$0xff]
        %v316 = vld [vmem:[%s200 + $0x1d4] sm:$0xff]
        %v317 = vld [vmem:[%s200 + $0x1dc] sm:$0xf]
        %v318 = vld [vmem:[%s200 + $0x1e0] sm:$0xff]
        %v319 = vld [vmem:[%s200 + $0x1e8] sm:$0xff]
        %v320 = vld [vmem:[%s200 + $0x1f0] sm:$0xf]
        %v321 = vld [vmem:[%s200 + $0x1f4] sm:$0xff]
        %v322 = vld [vmem:[%s200 + $0x1fc] sm:$0xff]
        %v323 = vld [vmem:[%s200 + $0x204] sm:$0xf]
        %v324 = vld [vmem:[%s200 + $0x208] sm:$0xff]
        %v325 = vld [vmem:[%s200 + $0x210] sm:$0xff]
        %v326 = vld [vmem:[%s200 + $0x218] sm:$0xf]
        %v327 = vld [vmem:[%s200 + $0x21c] sm:$0xff]
        %v328 = vld [vmem:[%s200 + $0x224] sm:$0xff]
        %v329 = vld [vmem:[%s200 + $0x22c] sm:$0xf]
        %v330 = vld [vmem:[%s200 + $0x230] sm:$0xff]
        %v331 = vld [vmem:[%s200 + $0x238] sm:$0xff]
        %v332 = vld [vmem:[%s200 + $0x240] sm:$0xf]
        %v333 = vld [vmem:[%s200 + $0x244] sm:$0xff]
        %v334 = vld [vmem:[%s200 + $0x24c] sm:$0xff]
        %v335 = vld [vmem:[%s200 + $0x254] sm:$0xf]
        %v336 = vld [vmem:[%s200 + $0x258] sm:$0xff]
        %v337 = vld [vmem:[%s200 + $0x260] sm:$0xff]
        %v338 = vld [vmem:[%s200 + $0x268] sm:$0xf]
        %v339 = vld [vmem:[%s200 + $0x26c] sm:$0xff]
        %v340 = vld [vmem:[%s200 + $0x274] sm:$0xff]
        %v341 = vld [vmem:[%s200 + $0x27c] sm:$0xf]
        %v342 = vld [vmem:[%s200 + $0x280] sm:$0xff]
        %v343 = vld [vmem:[%s200 + $0x288] sm:$0xff]
        %v344 = vld [vmem:[%s200 + $0x290] sm:$0xf]
        %v345 = vld [vmem:[%s200 + $0x294] sm:$0xff]
        %v346 = vld [vmem:[%s200 + $0x29c] sm:$0xff]
        %v347 = vld [vmem:[%s200 + $0x2a4] sm:$0xf]
        %v348 = vld [vmem:[%s200 + $0x2a8] sm:$0xff]
        %v349 = vld [vmem:[%s200 + $0x2b0] sm:$0xff]
        %v350 = vld [vmem:[%s200 + $0x2b8] sm:$0xf]
        %v351 = vld [vmem:[%s200 + $0x2bc] sm:$0xff]
        %v352 = vld [vmem:[%s200 + $0x2c4] sm:$0xff]
        %v353 = vld [vmem:[%s200 + $0x2cc] sm:$0xf]
        %v354 = vld [vmem:[%s200 + $0x2d0] sm:$0xff]
        %v355 = vld [vmem:[%s200 + $0x2d8] sm:$0xff]
        %v356 = vld [vmem:[%s200 + $0x2e0] sm:$0xf]
        %v357 = vld [vmem:[%s200 + $0x2e4] sm:$0xff]
        %v358 = vld [vmem:[%s200 + $0x2ec] sm:$0xff]
        %v359 = vld [vmem:[%s200 + $0x2f4] sm:$0xf]
        %v360 = vld [vmem:[%s200 + $0x2f8] sm:$0xff]
        %v361 = vld [vmem:[%s200 + $0x300] sm:$0xff]
        %v362 = vld [vmem:[%s200 + $0x308] sm:$0xf]
        %v363 = vld [vmem:[%s200 + $0x30c] sm:$0xff]
        %v364 = vld [vmem:[%s200 + $0x314] sm:$0xff]
        %v365 = vld [vmem:[%s200 + $0x31c] sm:$0xf]
        %v366 = vld [vmem:[%s200 + $0x320] sm:$0xff]
        %v367 = vld [vmem:[%s200 + $0x328] sm:$0xff]
        %v368 = vld [vmem:[%s200 + $0x330] sm:$0xf]
        %v369 = vld [vmem:[%s200 + $0x334] sm:$0xff]
        %v370 = vld [vmem:[%s200 + $0x33c] sm:$0xff]
        %v371 = vld [vmem:[%s200 + $0x344] sm:$0xf]
        %v372 = vld [vmem:[%s200 + $0x348] sm:$0xff]
        %v373 = vld [vmem:[%s200 + $0x350] sm:$0xff]
        %v374 = vld [vmem:[%s200 + $0x358] sm:$0xf]
        %v375 = vld [vmem:[%s200 + $0x35c] sm:$0xff]
        %v376 = vld [vmem:[%s200 + $0x364] sm:$0xff]
        %v377 = vld [vmem:[%s200 + $0x36c] sm:$0xf]
        %v378 = vld [vmem:[%s200 + $0x370] sm:$0xff]
        %v379 = vld [vmem:[%s200 + $0x378] sm:$0xff]
        %v380 = vld [vmem:[%s200 + $0x380] sm:$0xf]
        %v381 = vld [vmem:[%s200 + $0x384] sm:$0xff]
        %v382 = vld [vmem:[%s200 + $0x38c] sm:$0xff]
        %v383 = vld [vmem:[%s200 + $0x394] sm:$0xf]
        %v384 = vld [vmem:[%s200 + $0x398] sm:$0xff]
        %v385 = vld [vmem:[%s200 + $0x3a0] sm:$0xff]
        %v386 = vld [vmem:[%s200 + $0x3a8] sm:$0xf]
        %v387 = vld [vmem:[%s200 + $0x3ac] sm:$0xff]
        %v388 = vld [vmem:[%s200 + $0x3b4] sm:$0xff]
        %v389 = vld [vmem:[%s200 + $0x3bc] sm:$0xf]
        %v390 = vld [vmem:[%s200 + $0x3c0] sm:$0xff]
        %v391 = vld [vmem:[%s200 + $0x3c8] sm:$0xff]
        %v392 = vld [vmem:[%s200 + $0x3d0] sm:$0xf]
        %v393 = vld [vmem:[%s200 + $0x3d4] sm:$0xff]
        %v394 = vld [vmem:[%s200 + $0x3dc] sm:$0xff]
        %v395 = vld [vmem:[%s200 + $0x3e4] sm:$0xf]
        %v396 = vld [vmem:[%s200 + $0x3e8] sm:$0xff]
        %v397 = vld [vmem:[%s200 + $0x3f0] sm:$0xff]
        %v398 = vld [vmem:[%s200 + $0x3f8] sm:$0xf]
        %v399 = vld [vmem:[%s200 + $0x3fc] sm:$0xff]
        %v400 = vld [vmem:[%s200 + $0x404] sm:$0xff]
        %v401 = vld [vmem:[%s200 + $0x40c] sm:$0xf]
        %v402 = vld [vmem:[%s200 + $0x410] sm:$0xff]
        %v403 = vld [vmem:[%s200 + $0x418] sm:$0xff]
        %v404 = vld [vmem:[%s200 + $0x420] sm:$0xf]
        %v405 = vld [vmem:[%s200 + $0x424] sm:$0xff]
        %v406 = vld [vmem:[%s200 + $0x42c] sm:$0xff]
        %v407 = vld [vmem:[%s200 + $0x434] sm:$0xf]
        %v408 = vld [vmem:[%s200 + $0x438] sm:$0xff]
        %v409 = vld [vmem:[%s200 + $0x440] sm:$0xff]
        %v410 = vld [vmem:[%s200 + $0x448] sm:$0xf]
        %v411 = vld [vmem:[%s200 + $0x44c] sm:$0xff]
        %v412 = vld [vmem:[%s200 + $0x454] sm:$0xff]
        %v413 = vld [vmem:[%s200 + $0x45c] sm:$0xf]
        %v414 = vld [vmem:[%s200 + $0x460] sm:$0xff]
        %v415 = vld [vmem:[%s200 + $0x468] sm:$0xff]
        %v416 = vld [vmem:[%s200 + $0x470] sm:$0xf]
        %v417 = vld [vmem:[%s200 + $0x474] sm:$0xff]
        %v418 = vld [vmem:[%s200 + $0x47c] sm:$0xff]
        %v419 = vld [vmem:[%s200 + $0x484] sm:$0xf]
        %v420 = vld [vmem:[%s200 + $0x488] sm:$0xff]
        %v421 = vld [vmem:[%s200 + $0x490] sm:$0xff]
        %v422 = vld [vmem:[%s200 + $0x498] sm:$0xf]
        %v423 = vld [vmem:[%s200 + $0x49c] sm:$0xff]
        %v424 = vld [vmem:[%s200 + $0x4a4] sm:$0xff]
        %v425 = vld [vmem:[%s200 + $0x4ac] sm:$0xf]
        %v426 = vld [vmem:[%s200 + $0x4b0] sm:$0xff]
        %v427 = vld [vmem:[%s200 + $0x4b8] sm:$0xff]
        %v428 = vld [vmem:[%s200 + $0x4c0] sm:$0xf]
        %v429 = vld [vmem:[%s200 + $0x4c4] sm:$0xff]
        %v430 = vld [vmem:[%s200 + $0x4cc] sm:$0xff]
        %v431 = vld [vmem:[%s200 + $0x4d4] sm:$0xf]
        %v432 = vld [vmem:[%s200 + $0x4d8] sm:$0xff]
        %v433 = vld [vmem:[%s200 + $0x4e0] sm:$0xff]
        %v434 = vld [vmem:[%s200 + $0x4e8] sm:$0xf]
        %v435 = vld [vmem:[%s200 + $0x4ec] sm:$0xff]
        %v436 = vld [vmem:[%s200 + $0x4f4] sm:$0xff]
        %v437 = vld [vmem:[%s200 + $0x4fc] sm:$0xf]
        %v438 = vld [vmem:[%s200 + $0x500] sm:$0xff]
        %v439 = vld [vmem:[%s200 + $0x508] sm:$0xff]
        %v440 = vld [vmem:[%s200 + $0x510] sm:$0xf]
        %v441 = vld [vmem:[%s200 + $0x514] sm:$0xff]
        %v442 = vld [vmem:[%s200 + $0x51c] sm:$0xff]
        %v443 = vld [vmem:[%s200 + $0x524] sm:$0xf]
        %v444 = vld [vmem:[%s200 + $0x528] sm:$0xff]
        %v445 = vld [vmem:[%s200 + $0x530] sm:$0xff]
        %v446 = vld [vmem:[%s200 + $0x538] sm:$0xf]
        %v447 = vld [vmem:[%s200 + $0x53c] sm:$0xff]
        %v448 = vld [vmem:[%s200 + $0x544] sm:$0xff]
        %v449 = vld [vmem:[%s200 + $0x54c] sm:$0xf]
        %v450 = vld [vmem:[%s200 + $0x550] sm:$0xff]
        %v451 = vld [vmem:[%s200 + $0x558] sm:$0xff]
        %v452 = vld [vmem:[%s200 + $0x560] sm:$0xf]
        %v453 = vld [vmem:[%s200 + $0x564] sm:$0xff]
        %v454 = vld [vmem:[%s200 + $0x56c] sm:$0xff]
        %v455 = vld [vmem:[%s200 + $0x574] sm:$0xf]
        %v456 = vld [vmem:[%s200 + $0x578] sm:$0xff]
        %v457 = vld [vmem:[%s200 + $0x580] sm:$0xff]
        %v458 = vld [vmem:[%s200 + $0x588] sm:$0xf]
        %v459 = vld [vmem:[%s200 + $0x58c] sm:$0xff]
        %v460 = vld [vmem:[%s200 + $0x594] sm:$0xff]
        %v461 = vld [vmem:[%s200 + $0x59c] sm:$0xf]
        %v462 = vld [vmem:[%s200 + $0x5a0] sm:$0xff]
        %v463 = vld [vmem:[%s200 + $0x5a8] sm:$0xff]
        %v464 = vld [vmem:[%s200 + $0x5b0] sm:$0xf]
        %v465 = vld [vmem:[%s200 + $0x5b4] sm:$0xff]
        %v466 = vld [vmem:[%s200 + $0x5bc] sm:$0xff]
        %v467 = vld [vmem:[%s200 + $0x5c4] sm:$0xf]
        %v468 = vld [vmem:[%s200 + $0x5c8] sm:$0xff]
        %v469 = vld [vmem:[%s200 + $0x5d0] sm:$0xff]
        %v470 = vld [vmem:[%s200 + $0x5d8] sm:$0xf]
        %v471 = vld [vmem:[%s200 + $0x5dc] sm:$0xff]
        %v472 = vld [vmem:[%s200 + $0x5e4] sm:$0xff]
        %v473 = vld [vmem:[%s200 + $0x5ec] sm:$0xf]
        %v474 = vld [vmem:[%s200 + $0x5f0] sm:$0xff]
        %v475 = vld [vmem:[%s200 + $0x5f8] sm:$0xff]
        %v476 = vld [vmem:[%s200 + $0x600] sm:$0xf]
        %v477 = vld [vmem:[%s200 + $0x604] sm:$0xff]
        %v478 = vld [vmem:[%s200 + $0x60c] sm:$0xff]
        %v479 = vld [vmem:[%s200 + $0x614] sm:$0xf]
        %v480 = vld [vmem:[%s200 + $0x618] sm:$0xff]
        %v481 = vld [vmem:[%s200 + $0x620] sm:$0xff]
        %v482 = vld [vmem:[%s200 + $0x628] sm:$0xf]
        %v483 = vld [vmem:[%s200 + $0x62c] sm:$0xff]
        %v484 = vld [vmem:[%s200 + $0x634] sm:$0xff]
        %v485 = vld [vmem:[%s200 + $0x63c] sm:$0xf]
        %v486 = vld [vmem:[%s200 + $0x640] sm:$0xff]
        %v487 = vld [vmem:[%s200 + $0x648] sm:$0xff]
        %v488 = vld [vmem:[%s200 + $0x650] sm:$0xf]
        %v489 = vld [vmem:[%s200 + $0x654] sm:$0xff]
        %v490 = vld [vmem:[%s200 + $0x65c] sm:$0xff]
        %v491 = vld [vmem:[%s200 + $0x664] sm:$0xf]
        %v492 = vld [vmem:[%s200 + $0x668] sm:$0xff]
        %v493 = vld [vmem:[%s200 + $0x670] sm:$0xff]
        %v494 = vld [vmem:[%s200 + $0x678] sm:$0xf]
        %v495 = vld [vmem:[%s200 + $0x67c] sm:$0xff]
        %v496 = vld [vmem:[%s200 + $0x684] sm:$0xff]
        %v497 = vld [vmem:[%s200 + $0x68c] sm:$0xf]
        %v498 = vld [vmem:[%s200 + $0x690] sm:$0xff]
        %v499 = vld [vmem:[%s200 + $0x698] sm:$0xff]
        %v500 = vld [vmem:[%s200 + $0x6a0] sm:$0xf]
        %v501 = vld [vmem:[%s200 + $0x6a4] sm:$0xff]
        %v502 = vld [vmem:[%s200 + $0x6ac] sm:$0xff]
        %v503 = vld [vmem:[%s200 + $0x6b4] sm:$0xf]
        %v504 = vld [vmem:[%s200 + $0x6b8] sm:$0xff]
        %v505 = vld [vmem:[%s200 + $0x6c0] sm:$0xff]
        %v506 = vld [vmem:[%s200 + $0x6c8] sm:$0xf]
        %v507 = vld [vmem:[%s200 + $0x6cc] sm:$0xff]
        %v508 = vld [vmem:[%s200 + $0x6d4] sm:$0xff]
        %v509 = vld [vmem:[%s200 + $0x6dc] sm:$0xf]
        %v510 = vld [vmem:[%s200 + $0x6e0] sm:$0xff]
        %v511 = vld [vmem:[%s200 + $0x6e8] sm:$0xff]
        %v512 = vld [vmem:[%s200 + $0x6f0] sm:$0xf]
        %v513 = vld [vmem:[%s200 + $0x6f4] sm:$0xff]
        %v514 = vld [vmem:[%s200 + $0x6fc] sm:$0xff]
        %v515 = vld [vmem:[%s200 + $0x704] sm:$0xf]
        %v516 = vld [vmem:[%s200 + $0x708] sm:$0xff]
        %v517 = vld [vmem:[%s200 + $0x710] sm:$0xff]
        %v518 = vld [vmem:[%s200 + $0x718] sm:$0xf]
        %v519 = vld [vmem:[%s200 + $0x71c] sm:$0xff]
        %v520 = vld [vmem:[%s200 + $0x724] sm:$0xff]
        %v521 = vld [vmem:[%s200 + $0x72c] sm:$0xf]
        %v522 = vld [vmem:[%s200 + $0x730] sm:$0xff]
        %v523 = vld [vmem:[%s200 + $0x738] sm:$0xff]
        %v524 = vld [vmem:[%s200 + $0x740] sm:$0xf]
        %v525 = vld [vmem:[%s200 + $0x744] sm:$0xff]
        %v526 = vld [vmem:[%s200 + $0x74c] sm:$0xff]
        %v527 = vld [vmem:[%s200 + $0x754] sm:$0xf]
        %v528 = vld [vmem:[%s200 + $0x758] sm:$0xff]
        %v529 = vld [vmem:[%s200 + $0x760] sm:$0xff]
        %v530 = vld [vmem:[%s200 + $0x768] sm:$0xf]
        %v531 = vld [vmem:[%s200 + $0x76c] sm:$0xff]
        %v532 = vld [vmem:[%s200 + $0x774] sm:$0xff]
        %v533 = vld [vmem:[%s200 + $0x77c] sm:$0xf]
        %v534 = vld [vmem:[%s200 + $0x780] sm:$0xff]
        %v535 = vld [vmem:[%s200 + $0x788] sm:$0xff]
        %v536 = vld [vmem:[%s200 + $0x790] sm:$0xf]
        %v537 = vld [vmem:[%s200 + $0x794] sm:$0xff]
        %v538 = vld [vmem:[%s200 + $0x79c] sm:$0xff]
        %v539 = vld [vmem:[%s200 + $0x7a4] sm:$0xf]
        %v540 = vld [vmem:[%s200 + $0x7a8] sm:$0xff]
        %v541 = vld [vmem:[%s200 + $0x7b0] sm:$0xff]
        %v542 = vld [vmem:[%s200 + $0x7b8] sm:$0xf]
        %v543 = vld [vmem:[%s200 + $0x7bc] sm:$0xff]
        %v544 = vld [vmem:[%s200 + $0x7c4] sm:$0xff]
        %v545 = vld [vmem:[%s200 + $0x7cc] sm:$0xf]
        %v546 = vld [vmem:[%s200 + $0x7d0] sm:$0xff]
        %v547 = vld [vmem:[%s200 + $0x7d8] sm:$0xff]
        %v548 = vld [vmem:[%s200 + $0x7e0] sm:$0xf]
        %v549 = vld [vmem:[%s200 + $0x7e4] sm:$0xff]
        %v550 = vld [vmem:[%s200 + $0x7ec] sm:$0xff]
        %v551 = vld [vmem:[%s200 + $0x7f4] sm:$0xf]
        %v552 = vld [vmem:[%s200 + $0x7f8] sm:$0xff]
        %v553 = vld [vmem:[%s200 + $0x800] sm:$0xff]
        %v554 = vld [vmem:[%s200 + $0x808] sm:$0xf]
        %v555 = vld [vmem:[%s200 + $0x80c] sm:$0xff]
        %v556 = vld [vmem:[%s200 + $0x814] sm:$0xff]
        %v557 = vld [vmem:[%s200 + $0x81c] sm:$0xf]
        %v558 = vld [vmem:[%s200 + $0x820] sm:$0xff]
        %v559 = vld [vmem:[%s200 + $0x828] sm:$0xff]
        %v560 = vld [vmem:[%s200 + $0x830] sm:$0xf]
        %v561 = vld [vmem:[%s200 + $0x834] sm:$0xff]
        %v562 = vld [vmem:[%s200 + $0x83c] sm:$0xff]
        %v563 = vld [vmem:[%s200 + $0x844] sm:$0xf]
        %v564 = vld [vmem:[%s200 + $0x848] sm:$0xff]
        %v565 = vld [vmem:[%s200 + $0x850] sm:$0xff]
        %v566 = vld [vmem:[%s200 + $0x858] sm:$0xf]
        %v567 = vld [vmem:[%s200 + $0x85c] sm:$0xff]
        %v568 = vld [vmem:[%s200 + $0x864] sm:$0xff]
        %v569 = vld [vmem:[%s200 + $0x86c] sm:$0xf]
        %v570 = vld [vmem:[%s200 + $0x870] sm:$0xff]
        %v571 = vld [vmem:[%s200 + $0x878] sm:$0xff]
        %v572 = vld [vmem:[%s200 + $0x880] sm:$0xf]
        %v573 = vld [vmem:[%s200 + $0x884] sm:$0xff]
        %v574 = vld [vmem:[%s200 + $0x88c] sm:$0xff]
        %v575 = vld [vmem:[%s200 + $0x894] sm:$0xf]
        %v576 = vld [vmem:[%s200 + $0x898] sm:$0xff]
        %v577 = vld [vmem:[%s200 + $0x8a0] sm:$0xff]
        %v578 = vld [vmem:[%s200 + $0x8a8] sm:$0xf]
        %v579 = vld [vmem:[%s200 + $0x8ac] sm:$0xff]
        %v580 = vld [vmem:[%s200 + $0x8b4] sm:$0xff]
        %v581 = vld [vmem:[%s200 + $0x8bc] sm:$0xf]
        %v582 = vld [vmem:[%s200 + $0x8c0] sm:$0xff]
        %v583 = vld [vmem:[%s200 + $0x8c8] sm:$0xff]
        %v584 = vld [vmem:[%s200 + $0x8d0] sm:$0xf]
        %v585 = vld [vmem:[%s200 + $0x8d4] sm:$0xff]
        %v586 = vld [vmem:[%s200 + $0x8dc] sm:$0xff]
        %v587 = vld [vmem:[%s200 + $0x8e4] sm:$0xf]
        %v588 = vld [vmem:[%s200 + $0x8e8] sm:$0xff]
        %v589 = vld [vmem:[%s200 + $0x8f0] sm:$0xff]
        %v590 = vld [vmem:[%s200 + $0x8f8] sm:$0xf]
        %v591 = vld [vmem:[%s200 + $0x8fc] sm:$0xff]
        %v592 = vld [vmem:[%s200 + $0x904] sm:$0xff]
        %v593 = vld [vmem:[%s200 + $0x90c] sm:$0xf]
        %v594 = vld [vmem:[%s200 + $0x910] sm:$0xff]
        %v595 = vld [vmem:[%s200 + $0x918] sm:$0xff]
        %v596 = vld [vmem:[%s200 + $0x920] sm:$0xf]
        %v597 = vld [vmem:[%s200 + $0x924] sm:$0xff]
        %v598 = vld [vmem:[%s200 + $0x92c] sm:$0xff]
        %v599 = vld [vmem:[%s200 + $0x934] sm:$0xf]
        %v600 = vld [vmem:[%s200 + $0x938] sm:$0xff]
        %v601 = vld [vmem:[%s200 + $0x940] sm:$0xff]
        %v602 = vld [vmem:[%s200 + $0x948] sm:$0xf]
        %v603 = vld [vmem:[%s200 + $0x94c] sm:$0xff]
        %v604 = vld [vmem:[%s200 + $0x954] sm:$0xff]
        %v605 = vld [vmem:[%s200 + $0x95c] sm:$0xf]
        %v606 = vld [vmem:[%s200 + $0x960] sm:$0xff]
        %v607 = vld [vmem:[%s200 + $0x968] sm:$0xff]
        %v608 = vld [vmem:[%s200 + $0x970] sm:$0xf]
        %v609 = vld [vmem:[%s200 + $0x974] sm:$0xff]
        %v610 = vld [vmem:[%s200 + $0x97c] sm:$0xff]
        %v611 = vld [vmem:[%s200 + $0x984] sm:$0xf]
        %v612 = vld [vmem:[%s200 + $0x988] sm:$0xff]
        %v613 = vld [vmem:[%s200 + $0x990] sm:$0xff]
        %v614 = vld [vmem:[%s200 + $0x998] sm:$0xf]
        %v615 = vld [vmem:[%s200 + $0x99c] sm:$0xff]
        %v616 = vld [vmem:[%s200 + $0x9a4] sm:$0xff]
        %v617 = vld [vmem:[%s200 + $0x9ac] sm:$0xf]
        %v618 = vld [vmem:[%s200 + $0x9b0] sm:$0xff]
        %v619 = vld [vmem:[%s200 + $0x9b8] sm:$0xff]
        %v620 = vld [vmem:[%s200 + $0x9c0] sm:$0xf]
        %v621 = vld [vmem:[%s200 + $0x9c4] sm:$0xff]
        %v622 = vld [vmem:[%s200 + $0x9cc] sm:$0xff]
        %v623 = vld [vmem:[%s200 + $0x9d4] sm:$0xf]
        %v624 = vld [vmem:[%s200 + $0x9d8] sm:$0xff]
        %v625 = vld [vmem:[%s200 + $0x9e0] sm:$0xff]
        %v626 = vld [vmem:[%s200 + $0x9e8] sm:$0xf]
        %v627 = vld [vmem:[%s200 + $0x9ec] sm:$0xff]
        %v628 = vld [vmem:[%s200 + $0x9f4] sm:$0xff]
        %v629 = vld [vmem:[%s200 + $0x9fc] sm:$0xf]
        %v630 = vld [vmem:[%s200 + $0xa00] sm:$0xff]
        %v631 = vld [vmem:[%s200 + $0xa08] sm:$0xff]
        %v632 = vld [vmem:[%s200 + $0xa10] sm:$0xf]
        %v633 = vld [vmem:[%s200 + $0xa14] sm:$0xff]
        %v634 = vld [vmem:[%s200 + $0xa1c] sm:$0xff]
        %v635 = vld [vmem:[%s200 + $0xa24] sm:$0xf]
        %v636 = vld [vmem:[%s200 + $0xa28] sm:$0xff]
        %v637 = vld [vmem:[%s200 + $0xa30] sm:$0xff]
        %v638 = vld [vmem:[%s200 + $0xa38] sm:$0xf]
        %v639 = vld [vmem:[%s200 + $0xa3c] sm:$0xff]
        %v640 = vld [vmem:[%s200 + $0xa44] sm:$0xff]
        %v641 = vld [vmem:[%s200 + $0xa4c] sm:$0xf]
        %v642 = vld [vmem:[%s200 + $0xa50] sm:$0xff]
        %v643 = vld [vmem:[%s200 + $0xa58] sm:$0xff]
        %v644 = vld [vmem:[%s200 + $0xa60] sm:$0xf]
        %v645 = vld [vmem:[%s200 + $0xa64] sm:$0xff]
        %v646 = vld [vmem:[%s200 + $0xa6c] sm:$0xff]
        %v647 = vld [vmem:[%s200 + $0xa74] sm:$0xf]
        %v648 = vld [vmem:[%s200 + $0xa78] sm:$0xff]
        %v649 = vld [vmem:[%s200 + $0xa80] sm:$0xff]
        %v650 = vld [vmem:[%s200 + $0xa88] sm:$0xf]
        %v651 = vld [vmem:[%s200 + $0xa8c] sm:$0xff]
        %v652 = vld [vmem:[%s200 + $0xa94] sm:$0xff]
        %v653 = vld [vmem:[%s200 + $0xa9c] sm:$0xf]
        %v654 = vld [vmem:[%s200 + $0xaa0] sm:$0xff]
        %v655 = vld [vmem:[%s200 + $0xaa8] sm:$0xff]
        %v656 = vld [vmem:[%s200 + $0xab0] sm:$0xf]
        %v657 = vld [vmem:[%s200 + $0xab4] sm:$0xff]
        %v658 = vld [vmem:[%s200 + $0xabc] sm:$0xff]
        %v659 = vld [vmem:[%s200 + $0xac4] sm:$0xf]
        %v660 = vld [vmem:[%s200 + $0xac8] sm:$0xff]
        %v661 = vld [vmem:[%s200 + $0xad0] sm:$0xff]
        %v662 = vld [vmem:[%s200 + $0xad8] sm:$0xf]
        %v663 = vld [vmem:[%s200 + $0xadc] sm:$0xff]
        %v664 = vld [vmem:[%s200 + $0xae4] sm:$0xff]
        %v665 = vld [vmem:[%s200 + $0xaec] sm:$0xf]
        %v666 = vld [vmem:[%s200 + $0xaf0] sm:$0xff]
        %v667 = vld [vmem:[%s200 + $0xaf8] sm:$0xff]
        %v668 = vld [vmem:[%s200 + $0xb00] sm:$0xf]
        %v669 = vld [vmem:[%s200 + $0xb04] sm:$0xff]
        %v670 = vld [vmem:[%s200 + $0xb0c] sm:$0xff]
        %v671 = vld [vmem:[%s200 + $0xb14] sm:$0xf]
        %v672 = vld [vmem:[%s200 + $0xb18] sm:$0xff]
        %v673 = vld [vmem:[%s200 + $0xb20] sm:$0xff]
        %v674 = vld [vmem:[%s200 + $0xb28] sm:$0xf]
        %v675 = vld [vmem:[%s200 + $0xb2c] sm:$0xff]
        %v676 = vld [vmem:[%s200 + $0xb34] sm:$0xff]
        %v677 = vld [vmem:[%s200 + $0xb3c] sm:$0xf]
        %v678 = vld [vmem:[%s200 + $0xb40] sm:$0xff]
        %v679 = vld [vmem:[%s200 + $0xb48] sm:$0xff]
        %v680 = vld [vmem:[%s200 + $0xb50] sm:$0xf]
        %v681 = vld [vmem:[%s200 + $0xb54] sm:$0xff]
        %v682 = vld [vmem:[%s200 + $0xb5c] sm:$0xff]
        %v683 = vld [vmem:[%s200 + $0xb64] sm:$0xf]
        %v684 = vld [vmem:[%s200 + $0xb68] sm:$0xff]
        %v685 = vld [vmem:[%s200 + $0xb70] sm:$0xff]
        %v686 = vld [vmem:[%s200 + $0xb78] sm:$0xf]
        %v687 = vld [vmem:[%s200 + $0xb7c] sm:$0xff]
        %v688 = vld [vmem:[%s200 + $0xb84] sm:$0xff]
        %v689 = vld [vmem:[%s200 + $0xb8c] sm:$0xf]
        %v690 = vld [vmem:[%s200 + $0xb90] sm:$0xff]
        %v691 = vld [vmem:[%s200 + $0xb98] sm:$0xff]
        %v692 = vld [vmem:[%s200 + $0xba0] sm:$0xf]
        %v693 = vld [vmem:[%s200 + $0xba4] sm:$0xff]
        %v694 = vld [vmem:[%s200 + $0xbac] sm:$0xff]
        %v695 = vld [vmem:[%s200 + $0xbb4] sm:$0xf]
        %v696 = vld [vmem:[%s200 + $0xbb8] sm:$0xff]
        %v697 = vld [vmem:[%s200 + $0xbc0] sm:$0xff]
        %v698 = vld [vmem:[%s200 + $0xbc8] sm:$0xf]
        %v699 = vld [vmem:[%s200 + $0xbcc] sm:$0xff]
        %v700 = vld [vmem:[%s200 + $0xbd4] sm:$0xff]
        %v701 = vld [vmem:[%s200 + $0xbdc] sm:$0xf]
        %v702 = vld [vmem:[%s200 + $0xbe0] sm:$0xff]
        %v703 = vld [vmem:[%s200 + $0xbe8] sm:$0xff]
        %v704 = vld [vmem:[%s200 + $0xbf0] sm:$0xf]
        %v705 = vld [vmem:[%s200 + $0xbf4] sm:$0xff]
        %v706 = vld [vmem:[%s200 + $0xbfc] sm:$0xff]
        %v707 = vld [vmem:[%s200 + $0xc04] sm:$0xf]
        %v708 = vld [vmem:[%s200 + $0xc08] sm:$0xff]
        %v709 = vld [vmem:[%s200 + $0xc10] sm:$0xff]
        %v710 = vld [vmem:[%s200 + $0xc18] sm:$0xf]
        %v711 = vld [vmem:[%s200 + $0xc1c] sm:$0xff]
        %v712 = vld [vmem:[%s200 + $0xc24] sm:$0xff]
        %v713 = vld [vmem:[%s200 + $0xc2c] sm:$0xf]
        %v714 = vld [vmem:[%s200 + $0xc30] sm:$0xff]
        %v715 = vld [vmem:[%s200 + $0xc38] sm:$0xff]
        %v716 = vld [vmem:[%s200 + $0xc40] sm:$0xf]
        %v717 = vld [vmem:[%s200 + $0xc44] sm:$0xff]
        %v718 = vld [vmem:[%s200 + $0xc4c] sm:$0xff]
        %v719 = vld [vmem:[%s200 + $0xc54] sm:$0xf]
        %v720 = vld [vmem:[%s200 + $0xc58] sm:$0xff]
        %v721 = vld [vmem:[%s200 + $0xc60] sm:$0xff]
        %v722 = vld [vmem:[%s200 + $0xc68] sm:$0xf]
        %v723 = vld [vmem:[%s200 + $0xc6c] sm:$0xff]
        %v724 = vld [vmem:[%s200 + $0xc74] sm:$0xff]
        %v725 = vld [vmem:[%s200 + $0xc7c] sm:$0xf]
        %v726 = vld [vmem:[%s209] sm:$0x1f]
        %v728 = vlaneseq
        %v729 = vshrl.u32 %v728, 7
        %v730 = vsub.s32 0, %v729
        %v731 = vrot.slane %v726, %v730
        %v732 = vlaneseq
        %v733 = vshrl.u32 %v732, 7
        %v734 = vsub.s32 1, %v733
        %v735 = vrot.slane %v726, %v734
        %v736 = vlaneseq
        %v737 = vshrl.u32 %v736, 7
        %v738 = vsub.s32 2, %v737
        %v739 = vrot.slane %v726, %v738
        %v740 = vlaneseq
        %v741 = vshrl.u32 %v740, 7
        %v742 = vsub.s32 3, %v741
        %v743 = vrot.slane %v726, %v742
        %v744 = vlaneseq
        %v745 = vshrl.u32 %v744, 7
        %v746 = vsub.s32 4, %v745
        %v747 = vrot.slane %v726, %v746
        %v758 = vunpack.c.l.b16 %v241
        %v759 = vunpack.c.h.b16 %v241
        %v760 = vunpack.c.l.b16 %v242
        %v761 = vunpack.c.h.b16 %v242
        %v762 = vunpack.c.l.b16 %v243
        %v763 = vunpack.c.h.b16 %v243
        %v764 = vunpack.c.l.b16 %v244
        %v765 = vunpack.c.h.b16 %v244
        %v766 = vunpack.c.l.b16 %v245
        %v767 = vunpack.c.h.b16 %v245
        %v768 = vpack.c.b16 %v758, %v758
        %v769 = vpack.c.b16 %v759, %v759
        %v770 = vpack.c.b16 %v760, %v760
        %v771 = vpack.c.b16 %v761, %v761
        %v772 = vpack.c.b16 %v762, %v762
        %v773 = vpack.c.b16 %v763, %v763
        %v774 = vpack.c.b16 %v764, %v764
        %v775 = vpack.c.b16 %v765, %v765
        %v776 = vpack.c.b16 %v766, %v766
        %v777 = vpack.c.b16 %v767, %v767
        %v1268 = vunpack.c.l.b16 %v246
        %v1269 = vunpack.c.h.b16 %v246
        %v1270 = vunpack.c.l.b16 %v247
        %v1271 = vunpack.c.h.b16 %v247
        %v1272 = vunpack.c.l.b16 %v248
        %v1273 = vunpack.c.l.b16 %v249
        %v1274 = vunpack.c.h.b16 %v249
        %v1275 = vunpack.c.l.b16 %v250
        %v1276 = vunpack.c.h.b16 %v250
        %v1277 = vunpack.c.l.b16 %v251
        %v1278 = vunpack.c.l.b16 %v252
        %v1279 = vunpack.c.h.b16 %v252
        %v1280 = vunpack.c.l.b16 %v253
        %v1281 = vunpack.c.h.b16 %v253
        %v1282 = vunpack.c.l.b16 %v254
        %v1283 = vunpack.c.l.b16 %v255
        %v1284 = vunpack.c.h.b16 %v255
        %v1285 = vunpack.c.l.b16 %v256
        %v1286 = vunpack.c.h.b16 %v256
        %v1287 = vunpack.c.l.b16 %v257
        %v1288 = vunpack.c.l.b16 %v258
        %v1289 = vunpack.c.h.b16 %v258
        %v1290 = vunpack.c.l.b16 %v259
        %v1291 = vunpack.c.h.b16 %v259
        %v1292 = vunpack.c.l.b16 %v260
        %v1293 = vunpack.c.l.b16 %v261
        %v1294 = vunpack.c.h.b16 %v261
        %v1295 = vunpack.c.l.b16 %v262
        %v1296 = vunpack.c.h.b16 %v262
        %v1297 = vunpack.c.l.b16 %v263
        %v1298 = vunpack.c.l.b16 %v264
        %v1299 = vunpack.c.h.b16 %v264
        %v1300 = vunpack.c.l.b16 %v265
        %v1301 = vunpack.c.h.b16 %v265
        %v1302 = vunpack.c.l.b16 %v266
        %v1303 = vunpack.c.l.b16 %v267
        %v1304 = vunpack.c.h.b16 %v267
        %v1305 = vunpack.c.l.b16 %v268
        %v1306 = vunpack.c.h.b16 %v268
        %v1307 = vunpack.c.l.b16 %v269
        %v1308 = vunpack.c.l.b16 %v270
        %v1309 = vunpack.c.h.b16 %v270
        %v1310 = vunpack.c.l.b16 %v271
        %v1311 = vunpack.c.h.b16 %v271
        %v1312 = vunpack.c.l.b16 %v272
        %v1313 = vunpack.c.l.b16 %v273
        %v1314 = vunpack.c.h.b16 %v273
        %v1315 = vunpack.c.l.b16 %v274
        %v1316 = vunpack.c.h.b16 %v274
        %v1317 = vunpack.c.l.b16 %v275
        %v1318 = vunpack.c.l.b16 %v276
        %v1319 = vunpack.c.h.b16 %v276
        %v1320 = vunpack.c.l.b16 %v277
        %v1321 = vunpack.c.h.b16 %v277
        %v1322 = vunpack.c.l.b16 %v278
        %v1323 = vunpack.c.l.b16 %v279
        %v1324 = vunpack.c.h.b16 %v279
        %v1325 = vunpack.c.l.b16 %v280
        %v1326 = vunpack.c.h.b16 %v280
        %v1327 = vunpack.c.l.b16 %v281
        %v1328 = vunpack.c.l.b16 %v282
        %v1329 = vunpack.c.h.b16 %v282
        %v1330 = vunpack.c.l.b16 %v283
        %v1331 = vunpack.c.h.b16 %v283
        %v1332 = vunpack.c.l.b16 %v284
        %v1333 = vunpack.c.l.b16 %v285
        %v1334 = vunpack.c.h.b16 %v285
        %v1335 = vunpack.c.l.b16 %v286
        %v1336 = vunpack.c.h.b16 %v286
        %v1337 = vunpack.c.l.b16 %v287
        %v1338 = vunpack.c.l.b16 %v288
        %v1339 = vunpack.c.h.b16 %v288
        %v1340 = vunpack.c.l.b16 %v289
        %v1341 = vunpack.c.h.b16 %v289
        %v1342 = vunpack.c.l.b16 %v290
        %v1343 = vunpack.c.l.b16 %v291
        %v1344 = vunpack.c.h.b16 %v291
        %v1345 = vunpack.c.l.b16 %v292
        %v1346 = vunpack.c.h.b16 %v292
        %v1347 = vunpack.c.l.b16 %v293
        %v1348 = vunpack.c.l.b16 %v294
        %v1349 = vunpack.c.h.b16 %v294
        %v1350 = vunpack.c.l.b16 %v295
        %v1351 = vunpack.c.h.b16 %v295
        %v1352 = vunpack.c.l.b16 %v296
        %v1353 = vunpack.c.l.b16 %v297
        %v1354 = vunpack.c.h.b16 %v297
        %v1355 = vunpack.c.l.b16 %v298
        %v1356 = vunpack.c.h.b16 %v298
        %v1357 = vunpack.c.l.b16 %v299
        %v1358 = vunpack.c.l.b16 %v300
        %v1359 = vunpack.c.h.b16 %v300
        %v1360 = vunpack.c.l.b16 %v301
        %v1361 = vunpack.c.h.b16 %v301
        %v1362 = vunpack.c.l.b16 %v302
        %v1363 = vunpack.c.l.b16 %v303
        %v1364 = vunpack.c.h.b16 %v303
        %v1365 = vunpack.c.l.b16 %v304
        %v1366 = vunpack.c.h.b16 %v304
        %v1367 = vunpack.c.l.b16 %v305
        %v1368 = vunpack.c.l.b16 %v306
        %v1369 = vunpack.c.h.b16 %v306
        %v1370 = vunpack.c.l.b16 %v307
        %v1371 = vunpack.c.h.b16 %v307
        %v1372 = vunpack.c.l.b16 %v308
        %v1373 = vunpack.c.l.b16 %v309
        %v1374 = vunpack.c.h.b16 %v309
        %v1375 = vunpack.c.l.b16 %v310
        %v1376 = vunpack.c.h.b16 %v310
        %v1377 = vunpack.c.l.b16 %v311
        %v1378 = vunpack.c.l.b16 %v312
        %v1379 = vunpack.c.h.b16 %v312
        %v1380 = vunpack.c.l.b16 %v313
        %v1381 = vunpack.c.h.b16 %v313
        %v1382 = vunpack.c.l.b16 %v314
        %v1383 = vunpack.c.l.b16 %v315
        %v1384 = vunpack.c.h.b16 %v315
        %v1385 = vunpack.c.l.b16 %v316
        %v1386 = vunpack.c.h.b16 %v316
        %v1387 = vunpack.c.l.b16 %v317
        %v1388 = vunpack.c.l.b16 %v318
        %v1389 = vunpack.c.h.b16 %v318
        %v1390 = vunpack.c.l.b16 %v319
        %v1391 = vunpack.c.h.b16 %v319
        %v1392 = vunpack.c.l.b16 %v320
        %v1393 = vunpack.c.l.b16 %v321
        %v1394 = vunpack.c.h.b16 %v321
        %v1395 = vunpack.c.l.b16 %v322
        %v1396 = vunpack.c.h.b16 %v322
        %v1397 = vunpack.c.l.b16 %v323
        %v1398 = vunpack.c.l.b16 %v324
        %v1399 = vunpack.c.h.b16 %v324
        %v1400 = vunpack.c.l.b16 %v325
        %v1401 = vunpack.c.h.b16 %v325
        %v1402 = vunpack.c.l.b16 %v326
        %v1403 = vunpack.c.l.b16 %v327
        %v1404 = vunpack.c.h.b16 %v327
        %v1405 = vunpack.c.l.b16 %v328
        %v1406 = vunpack.c.h.b16 %v328
        %v1407 = vunpack.c.l.b16 %v329
        %v1408 = vunpack.c.l.b16 %v330
        %v1409 = vunpack.c.h.b16 %v330
        %v1410 = vunpack.c.l.b16 %v331
        %v1411 = vunpack.c.h.b16 %v331
        %v1412 = vunpack.c.l.b16 %v332
        %v1413 = vunpack.c.l.b16 %v333
        %v1414 = vunpack.c.h.b16 %v333
        %v1415 = vunpack.c.l.b16 %v334
        %v1416 = vunpack.c.h.b16 %v334
        %v1417 = vunpack.c.l.b16 %v335
        %v1418 = vunpack.c.l.b16 %v336
        %v1419 = vunpack.c.h.b16 %v336
        %v1420 = vunpack.c.l.b16 %v337
        %v1421 = vunpack.c.h.b16 %v337
        %v1422 = vunpack.c.l.b16 %v338
        %v1423 = vunpack.c.l.b16 %v339
        %v1424 = vunpack.c.h.b16 %v339
        %v1425 = vunpack.c.l.b16 %v340
        %v1426 = vunpack.c.h.b16 %v340
        %v1427 = vunpack.c.l.b16 %v341
        %v1428 = vunpack.c.l.b16 %v342
        %v1429 = vunpack.c.h.b16 %v342
        %v1430 = vunpack.c.l.b16 %v343
        %v1431 = vunpack.c.h.b16 %v343
        %v1432 = vunpack.c.l.b16 %v344
        %v1433 = vunpack.c.l.b16 %v345
        %v1434 = vunpack.c.h.b16 %v345
        %v1435 = vunpack.c.l.b16 %v346
        %v1436 = vunpack.c.h.b16 %v346
        %v1437 = vunpack.c.l.b16 %v347
        %v1438 = vunpack.c.l.b16 %v348
        %v1439 = vunpack.c.h.b16 %v348
        %v1440 = vunpack.c.l.b16 %v349
        %v1441 = vunpack.c.h.b16 %v349
        %v1442 = vunpack.c.l.b16 %v350
        %v1443 = vunpack.c.l.b16 %v351
        %v1444 = vunpack.c.h.b16 %v351
        %v1445 = vunpack.c.l.b16 %v352
        %v1446 = vunpack.c.h.b16 %v352
        %v1447 = vunpack.c.l.b16 %v353
        %v1448 = vunpack.c.l.b16 %v354
        %v1449 = vunpack.c.h.b16 %v354
        %v1450 = vunpack.c.l.b16 %v355
        %v1451 = vunpack.c.h.b16 %v355
        %v1452 = vunpack.c.l.b16 %v356
        %v1453 = vunpack.c.l.b16 %v357
        %v1454 = vunpack.c.h.b16 %v357
        %v1455 = vunpack.c.l.b16 %v358
        %v1456 = vunpack.c.h.b16 %v358
        %v1457 = vunpack.c.l.b16 %v359
        %v1458 = vunpack.c.l.b16 %v360
        %v1459 = vunpack.c.h.b16 %v360
        %v1460 = vunpack.c.l.b16 %v361
        %v1461 = vunpack.c.h.b16 %v361
        %v1462 = vunpack.c.l.b16 %v362
        %v1463 = vunpack.c.l.b16 %v363
        %v1464 = vunpack.c.h.b16 %v363
        %v1465 = vunpack.c.l.b16 %v364
        %v1466 = vunpack.c.h.b16 %v364
        %v1467 = vunpack.c.l.b16 %v365
        %v1468 = vunpack.c.l.b16 %v366
        %v1469 = vunpack.c.h.b16 %v366
        %v1470 = vunpack.c.l.b16 %v367
        %v1471 = vunpack.c.h.b16 %v367
        %v1472 = vunpack.c.l.b16 %v368
        %v1473 = vunpack.c.l.b16 %v369
        %v1474 = vunpack.c.h.b16 %v369
        %v1475 = vunpack.c.l.b16 %v370
        %v1476 = vunpack.c.h.b16 %v370
        %v1477 = vunpack.c.l.b16 %v371
        %v1478 = vunpack.c.l.b16 %v372
        %v1479 = vunpack.c.h.b16 %v372
        %v1480 = vunpack.c.l.b16 %v373
        %v1481 = vunpack.c.h.b16 %v373
        %v1482 = vunpack.c.l.b16 %v374
        %v1483 = vunpack.c.l.b16 %v375
        %v1484 = vunpack.c.h.b16 %v375
        %v1485 = vunpack.c.l.b16 %v376
        %v1486 = vunpack.c.h.b16 %v376
        %v1487 = vunpack.c.l.b16 %v377
        %v1488 = vunpack.c.l.b16 %v378
        %v1489 = vunpack.c.h.b16 %v378
        %v1490 = vunpack.c.l.b16 %v379
        %v1491 = vunpack.c.h.b16 %v379
        %v1492 = vunpack.c.l.b16 %v380
        %v1493 = vunpack.c.l.b16 %v381
        %v1494 = vunpack.c.h.b16 %v381
        %v1495 = vunpack.c.l.b16 %v382
        %v1496 = vunpack.c.h.b16 %v382
        %v1497 = vunpack.c.l.b16 %v383
        %v1498 = vunpack.c.l.b16 %v384
        %v1499 = vunpack.c.h.b16 %v384
        %v1500 = vunpack.c.l.b16 %v385
        %v1501 = vunpack.c.h.b16 %v385
        %v1502 = vunpack.c.l.b16 %v386
        %v1503 = vunpack.c.l.b16 %v387
        %v1504 = vunpack.c.h.b16 %v387
        %v1505 = vunpack.c.l.b16 %v388
        %v1506 = vunpack.c.h.b16 %v388
        %v1507 = vunpack.c.l.b16 %v389
        %v1508 = vunpack.c.l.b16 %v390
        %v1509 = vunpack.c.h.b16 %v390
        %v1510 = vunpack.c.l.b16 %v391
        %v1511 = vunpack.c.h.b16 %v391
        %v1512 = vunpack.c.l.b16 %v392
        %v1513 = vunpack.c.l.b16 %v393
        %v1514 = vunpack.c.h.b16 %v393
        %v1515 = vunpack.c.l.b16 %v394
        %v1516 = vunpack.c.h.b16 %v394
        %v1517 = vunpack.c.l.b16 %v395
        %v1518 = vunpack.c.l.b16 %v396
        %v1519 = vunpack.c.h.b16 %v396
        %v1520 = vunpack.c.l.b16 %v397
        %v1521 = vunpack.c.h.b16 %v397
        %v1522 = vunpack.c.l.b16 %v398
        %v1523 = vunpack.c.l.b16 %v399
        %v1524 = vunpack.c.h.b16 %v399
        %v1525 = vunpack.c.l.b16 %v400
        %v1526 = vunpack.c.h.b16 %v400
        %v1527 = vunpack.c.l.b16 %v401
        %v1528 = vunpack.c.l.b16 %v402
        %v1529 = vunpack.c.h.b16 %v402
        %v1530 = vunpack.c.l.b16 %v403
        %v1531 = vunpack.c.h.b16 %v403
        %v1532 = vunpack.c.l.b16 %v404
        %v1533 = vunpack.c.l.b16 %v405
        %v1534 = vunpack.c.h.b16 %v405
        %v1535 = vunpack.c.l.b16 %v406
        %v1536 = vunpack.c.h.b16 %v406
        %v1537 = vunpack.c.l.b16 %v407
        %v1538 = vunpack.c.l.b16 %v408
        %v1539 = vunpack.c.h.b16 %v408
        %v1540 = vunpack.c.l.b16 %v409
        %v1541 = vunpack.c.h.b16 %v409
        %v1542 = vunpack.c.l.b16 %v410
        %v1543 = vunpack.c.l.b16 %v411
        %v1544 = vunpack.c.h.b16 %v411
        %v1545 = vunpack.c.l.b16 %v412
        %v1546 = vunpack.c.h.b16 %v412
        %v1547 = vunpack.c.l.b16 %v413
        %v1548 = vunpack.c.l.b16 %v414
        %v1549 = vunpack.c.h.b16 %v414
        %v1550 = vunpack.c.l.b16 %v415
        %v1551 = vunpack.c.h.b16 %v415
        %v1552 = vunpack.c.l.b16 %v416
        %v1553 = vunpack.c.l.b16 %v417
        %v1554 = vunpack.c.h.b16 %v417
        %v1555 = vunpack.c.l.b16 %v418
        %v1556 = vunpack.c.h.b16 %v418
        %v1557 = vunpack.c.l.b16 %v419
        %v1558 = vunpack.c.l.b16 %v420
        %v1559 = vunpack.c.h.b16 %v420
        %v1560 = vunpack.c.l.b16 %v421
        %v1561 = vunpack.c.h.b16 %v421
        %v1562 = vunpack.c.l.b16 %v422
        %v1563 = vunpack.c.l.b16 %v423
        %v1564 = vunpack.c.h.b16 %v423
        %v1565 = vunpack.c.l.b16 %v424
        %v1566 = vunpack.c.h.b16 %v424
        %v1567 = vunpack.c.l.b16 %v425
        %v1568 = vunpack.c.l.b16 %v426
        %v1569 = vunpack.c.h.b16 %v426
        %v1570 = vunpack.c.l.b16 %v427
        %v1571 = vunpack.c.h.b16 %v427
        %v1572 = vunpack.c.l.b16 %v428
        %v1573 = vunpack.c.l.b16 %v429
        %v1574 = vunpack.c.h.b16 %v429
        %v1575 = vunpack.c.l.b16 %v430
        %v1576 = vunpack.c.h.b16 %v430
        %v1577 = vunpack.c.l.b16 %v431
        %v1578 = vunpack.c.l.b16 %v432
        %v1579 = vunpack.c.h.b16 %v432
        %v1580 = vunpack.c.l.b16 %v433
        %v1581 = vunpack.c.h.b16 %v433
        %v1582 = vunpack.c.l.b16 %v434
        %v1583 = vunpack.c.l.b16 %v435
        %v1584 = vunpack.c.h.b16 %v435
        %v1585 = vunpack.c.l.b16 %v436
        %v1586 = vunpack.c.h.b16 %v436
        %v1587 = vunpack.c.l.b16 %v437
        %v1588 = vunpack.c.l.b16 %v438
        %v1589 = vunpack.c.h.b16 %v438
        %v1590 = vunpack.c.l.b16 %v439
        %v1591 = vunpack.c.h.b16 %v439
        %v1592 = vunpack.c.l.b16 %v440
        %v1593 = vunpack.c.l.b16 %v441
        %v1594 = vunpack.c.h.b16 %v441
        %v1595 = vunpack.c.l.b16 %v442
        %v1596 = vunpack.c.h.b16 %v442
        %v1597 = vunpack.c.l.b16 %v443
        %v1598 = vunpack.c.l.b16 %v444
        %v1599 = vunpack.c.h.b16 %v444
        %v1600 = vunpack.c.l.b16 %v445
        %v1601 = vunpack.c.h.b16 %v445
        %v1602 = vunpack.c.l.b16 %v446
        %v1603 = vunpack.c.l.b16 %v447
        %v1604 = vunpack.c.h.b16 %v447
        %v1605 = vunpack.c.l.b16 %v448
        %v1606 = vunpack.c.h.b16 %v448
        %v1607 = vunpack.c.l.b16 %v449
        %v1608 = vunpack.c.l.b16 %v450
        %v1609 = vunpack.c.h.b16 %v450
        %v1610 = vunpack.c.l.b16 %v451
        %v1611 = vunpack.c.h.b16 %v451
        %v1612 = vunpack.c.l.b16 %v452
        %v1613 = vunpack.c.l.b16 %v453
        %v1614 = vunpack.c.h.b16 %v453
        %v1615 = vunpack.c.l.b16 %v454
        %v1616 = vunpack.c.h.b16 %v454
        %v1617 = vunpack.c.l.b16 %v455
        %v1618 = vunpack.c.l.b16 %v456
        %v1619 = vunpack.c.h.b16 %v456
        %v1620 = vunpack.c.l.b16 %v457
        %v1621 = vunpack.c.h.b16 %v457
        %v1622 = vunpack.c.l.b16 %v458
        %v1623 = vunpack.c.l.b16 %v459
        %v1624 = vunpack.c.h.b16 %v459
        %v1625 = vunpack.c.l.b16 %v460
        %v1626 = vunpack.c.h.b16 %v460
        %v1627 = vunpack.c.l.b16 %v461
        %v1628 = vunpack.c.l.b16 %v462
        %v1629 = vunpack.c.h.b16 %v462
        %v1630 = vunpack.c.l.b16 %v463
        %v1631 = vunpack.c.h.b16 %v463
        %v1632 = vunpack.c.l.b16 %v464
        %v1633 = vunpack.c.l.b16 %v465
        %v1634 = vunpack.c.h.b16 %v465
        %v1635 = vunpack.c.l.b16 %v466
        %v1636 = vunpack.c.h.b16 %v466
        %v1637 = vunpack.c.l.b16 %v467
        %v1638 = vunpack.c.l.b16 %v468
        %v1639 = vunpack.c.h.b16 %v468
        %v1640 = vunpack.c.l.b16 %v469
        %v1641 = vunpack.c.h.b16 %v469
        %v1642 = vunpack.c.l.b16 %v470
        %v1643 = vunpack.c.l.b16 %v471
        %v1644 = vunpack.c.h.b16 %v471
        %v1645 = vunpack.c.l.b16 %v472
        %v1646 = vunpack.c.h.b16 %v472
        %v1647 = vunpack.c.l.b16 %v473
        %v1648 = vunpack.c.l.b16 %v474
        %v1649 = vunpack.c.h.b16 %v474
        %v1650 = vunpack.c.l.b16 %v475
        %v1651 = vunpack.c.h.b16 %v475
        %v1652 = vunpack.c.l.b16 %v476
        %v1653 = vunpack.c.l.b16 %v477
        %v1654 = vunpack.c.h.b16 %v477
        %v1655 = vunpack.c.l.b16 %v478
        %v1656 = vunpack.c.h.b16 %v478
        %v1657 = vunpack.c.l.b16 %v479
        %v1658 = vunpack.c.l.b16 %v480
        %v1659 = vunpack.c.h.b16 %v480
        %v1660 = vunpack.c.l.b16 %v481
        %v1661 = vunpack.c.h.b16 %v481
        %v1662 = vunpack.c.l.b16 %v482
        %v1663 = vunpack.c.l.b16 %v483
        %v1664 = vunpack.c.h.b16 %v483
        %v1665 = vunpack.c.l.b16 %v484
        %v1666 = vunpack.c.h.b16 %v484
        %v1667 = vunpack.c.l.b16 %v485
        %v1668 = vunpack.c.l.b16 %v486
        %v1669 = vunpack.c.h.b16 %v486
        %v1670 = vunpack.c.l.b16 %v487
        %v1671 = vunpack.c.h.b16 %v487
        %v1672 = vunpack.c.l.b16 %v488
        %v1673 = vunpack.c.l.b16 %v489
        %v1674 = vunpack.c.h.b16 %v489
        %v1675 = vunpack.c.l.b16 %v490
        %v1676 = vunpack.c.h.b16 %v490
        %v1677 = vunpack.c.l.b16 %v491
        %v1678 = vunpack.c.l.b16 %v492
        %v1679 = vunpack.c.h.b16 %v492
        %v1680 = vunpack.c.l.b16 %v493
        %v1681 = vunpack.c.h.b16 %v493
        %v1682 = vunpack.c.l.b16 %v494
        %v1683 = vunpack.c.l.b16 %v495
        %v1684 = vunpack.c.h.b16 %v495
        %v1685 = vunpack.c.l.b16 %v496
        %v1686 = vunpack.c.h.b16 %v496
        %v1687 = vunpack.c.l.b16 %v497
        %v1688 = vunpack.c.l.b16 %v498
        %v1689 = vunpack.c.h.b16 %v498
        %v1690 = vunpack.c.l.b16 %v499
        %v1691 = vunpack.c.h.b16 %v499
        %v1692 = vunpack.c.l.b16 %v500
        %v1693 = vunpack.c.l.b16 %v501
        %v1694 = vunpack.c.h.b16 %v501
        %v1695 = vunpack.c.l.b16 %v502
        %v1696 = vunpack.c.h.b16 %v502
        %v1697 = vunpack.c.l.b16 %v503
        %v1698 = vunpack.c.l.b16 %v504
        %v1699 = vunpack.c.h.b16 %v504
        %v1700 = vunpack.c.l.b16 %v505
        %v1701 = vunpack.c.h.b16 %v505
        %v1702 = vunpack.c.l.b16 %v506
        %v1703 = vunpack.c.l.b16 %v507
        %v1704 = vunpack.c.h.b16 %v507
        %v1705 = vunpack.c.l.b16 %v508
        %v1706 = vunpack.c.h.b16 %v508
        %v1707 = vunpack.c.l.b16 %v509
        %v1708 = vunpack.c.l.b16 %v510
        %v1709 = vunpack.c.h.b16 %v510
        %v1710 = vunpack.c.l.b16 %v511
        %v1711 = vunpack.c.h.b16 %v511
        %v1712 = vunpack.c.l.b16 %v512
        %v1713 = vunpack.c.l.b16 %v513
        %v1714 = vunpack.c.h.b16 %v513
        %v1715 = vunpack.c.l.b16 %v514
        %v1716 = vunpack.c.h.b16 %v514
        %v1717 = vunpack.c.l.b16 %v515
        %v1718 = vunpack.c.l.b16 %v516
        %v1719 = vunpack.c.h.b16 %v516
        %v1720 = vunpack.c.l.b16 %v517
        %v1721 = vunpack.c.h.b16 %v517
        %v1722 = vunpack.c.l.b16 %v518
        %v1723 = vunpack.c.l.b16 %v519
        %v1724 = vunpack.c.h.b16 %v519
        %v1725 = vunpack.c.l.b16 %v520
        %v1726 = vunpack.c.h.b16 %v520
        %v1727 = vunpack.c.l.b16 %v521
        %v1728 = vunpack.c.l.b16 %v522
        %v1729 = vunpack.c.h.b16 %v522
        %v1730 = vunpack.c.l.b16 %v523
        %v1731 = vunpack.c.h.b16 %v523
        %v1732 = vunpack.c.l.b16 %v524
        %v1733 = vunpack.c.l.b16 %v525
        %v1734 = vunpack.c.h.b16 %v525
        %v1735 = vunpack.c.l.b16 %v526
        %v1736 = vunpack.c.h.b16 %v526
        %v1737 = vunpack.c.l.b16 %v527
        %v1738 = vunpack.c.l.b16 %v528
        %v1739 = vunpack.c.h.b16 %v528
        %v1740 = vunpack.c.l.b16 %v529
        %v1741 = vunpack.c.h.b16 %v529
        %v1742 = vunpack.c.l.b16 %v530
        %v1743 = vunpack.c.l.b16 %v531
        %v1744 = vunpack.c.h.b16 %v531
        %v1745 = vunpack.c.l.b16 %v532
        %v1746 = vunpack.c.h.b16 %v532
        %v1747 = vunpack.c.l.b16 %v533
        %v1748 = vunpack.c.l.b16 %v534
        %v1749 = vunpack.c.h.b16 %v534
        %v1750 = vunpack.c.l.b16 %v535
        %v1751 = vunpack.c.h.b16 %v535
        %v1752 = vunpack.c.l.b16 %v536
        %v1753 = vunpack.c.l.b16 %v537
        %v1754 = vunpack.c.h.b16 %v537
        %v1755 = vunpack.c.l.b16 %v538
        %v1756 = vunpack.c.h.b16 %v538
        %v1757 = vunpack.c.l.b16 %v539
        %v1758 = vunpack.c.l.b16 %v540
        %v1759 = vunpack.c.h.b16 %v540
        %v1760 = vunpack.c.l.b16 %v541
        %v1761 = vunpack.c.h.b16 %v541
        %v1762 = vunpack.c.l.b16 %v542
        %v1763 = vunpack.c.l.b16 %v543
        %v1764 = vunpack.c.h.b16 %v543
        %v1765 = vunpack.c.l.b16 %v544
        %v1766 = vunpack.c.h.b16 %v544
        %v1767 = vunpack.c.l.b16 %v545
        %v1768 = vunpack.c.l.b16 %v546
        %v1769 = vunpack.c.h.b16 %v546
        %v1770 = vunpack.c.l.b16 %v547
        %v1771 = vunpack.c.h.b16 %v547
        %v1772 = vunpack.c.l.b16 %v548
        %v1773 = vunpack.c.l.b16 %v549
        %v1774 = vunpack.c.h.b16 %v549
        %v1775 = vunpack.c.l.b16 %v550
        %v1776 = vunpack.c.h.b16 %v550
        %v1777 = vunpack.c.l.b16 %v551
        %v1778 = vunpack.c.l.b16 %v552
        %v1779 = vunpack.c.h.b16 %v552
        %v1780 = vunpack.c.l.b16 %v553
        %v1781 = vunpack.c.h.b16 %v553
        %v1782 = vunpack.c.l.b16 %v554
        %v1783 = vunpack.c.l.b16 %v555
        %v1784 = vunpack.c.h.b16 %v555
        %v1785 = vunpack.c.l.b16 %v556
        %v1786 = vunpack.c.h.b16 %v556
        %v1787 = vunpack.c.l.b16 %v557
        %v1788 = vunpack.c.l.b16 %v558
        %v1789 = vunpack.c.h.b16 %v558
        %v1790 = vunpack.c.l.b16 %v559
        %v1791 = vunpack.c.h.b16 %v559
        %v1792 = vunpack.c.l.b16 %v560
        %v1793 = vunpack.c.l.b16 %v561
        %v1794 = vunpack.c.h.b16 %v561
        %v1795 = vunpack.c.l.b16 %v562
        %v1796 = vunpack.c.h.b16 %v562
        %v1797 = vunpack.c.l.b16 %v563
        %v1798 = vunpack.c.l.b16 %v564
        %v1799 = vunpack.c.h.b16 %v564
        %v1800 = vunpack.c.l.b16 %v565
        %v1801 = vunpack.c.h.b16 %v565
        %v1802 = vunpack.c.l.b16 %v566
        %v1803 = vunpack.c.l.b16 %v567
        %v1804 = vunpack.c.h.b16 %v567
        %v1805 = vunpack.c.l.b16 %v568
        %v1806 = vunpack.c.h.b16 %v568
        %v1807 = vunpack.c.l.b16 %v569
        %v1808 = vunpack.c.l.b16 %v570
        %v1809 = vunpack.c.h.b16 %v570
        %v1810 = vunpack.c.l.b16 %v571
        %v1811 = vunpack.c.h.b16 %v571
        %v1812 = vunpack.c.l.b16 %v572
        %v1813 = vunpack.c.l.b16 %v573
        %v1814 = vunpack.c.h.b16 %v573
        %v1815 = vunpack.c.l.b16 %v574
        %v1816 = vunpack.c.h.b16 %v574
        %v1817 = vunpack.c.l.b16 %v575
        %v1818 = vunpack.c.l.b16 %v576
        %v1819 = vunpack.c.h.b16 %v576
        %v1820 = vunpack.c.l.b16 %v577
        %v1821 = vunpack.c.h.b16 %v577
        %v1822 = vunpack.c.l.b16 %v578
        %v1823 = vunpack.c.l.b16 %v579
        %v1824 = vunpack.c.h.b16 %v579
        %v1825 = vunpack.c.l.b16 %v580
        %v1826 = vunpack.c.h.b16 %v580
        %v1827 = vunpack.c.l.b16 %v581
        %v1828 = vunpack.c.l.b16 %v582
        %v1829 = vunpack.c.h.b16 %v582
        %v1830 = vunpack.c.l.b16 %v583
        %v1831 = vunpack.c.h.b16 %v583
        %v1832 = vunpack.c.l.b16 %v584
        %v1833 = vunpack.c.l.b16 %v585
        %v1834 = vunpack.c.h.b16 %v585
        %v1835 = vunpack.c.l.b16 %v586
        %v1836 = vunpack.c.h.b16 %v586
        %v1837 = vunpack.c.l.b16 %v587
        %v1838 = vunpack.c.l.b16 %v588
        %v1839 = vunpack.c.h.b16 %v588
        %v1840 = vunpack.c.l.b16 %v589
        %v1841 = vunpack.c.h.b16 %v589
        %v1842 = vunpack.c.l.b16 %v590
        %v1843 = vunpack.c.l.b16 %v591
        %v1844 = vunpack.c.h.b16 %v591
        %v1845 = vunpack.c.l.b16 %v592
        %v1846 = vunpack.c.h.b16 %v592
        %v1847 = vunpack.c.l.b16 %v593
        %v1848 = vunpack.c.l.b16 %v594
        %v1849 = vunpack.c.h.b16 %v594
        %v1850 = vunpack.c.l.b16 %v595
        %v1851 = vunpack.c.h.b16 %v595
        %v1852 = vunpack.c.l.b16 %v596
        %v1853 = vunpack.c.l.b16 %v597
        %v1854 = vunpack.c.h.b16 %v597
        %v1855 = vunpack.c.l.b16 %v598
        %v1856 = vunpack.c.h.b16 %v598
        %v1857 = vunpack.c.l.b16 %v599
        %v1858 = vunpack.c.l.b16 %v600
        %v1859 = vunpack.c.h.b16 %v600
        %v1860 = vunpack.c.l.b16 %v601
        %v1861 = vunpack.c.h.b16 %v601
        %v1862 = vunpack.c.l.b16 %v602
        %v1863 = vunpack.c.l.b16 %v603
        %v1864 = vunpack.c.h.b16 %v603
        %v1865 = vunpack.c.l.b16 %v604
        %v1866 = vunpack.c.h.b16 %v604
        %v1867 = vunpack.c.l.b16 %v605
        %v1868 = vunpack.c.l.b16 %v606
        %v1869 = vunpack.c.h.b16 %v606
        %v1870 = vunpack.c.l.b16 %v607
        %v1871 = vunpack.c.h.b16 %v607
        %v1872 = vunpack.c.l.b16 %v608
        %v1873 = vunpack.c.l.b16 %v609
        %v1874 = vunpack.c.h.b16 %v609
        %v1875 = vunpack.c.l.b16 %v610
        %v1876 = vunpack.c.h.b16 %v610
        %v1877 = vunpack.c.l.b16 %v611
        %v1878 = vunpack.c.l.b16 %v612
        %v1879 = vunpack.c.h.b16 %v612
        %v1880 = vunpack.c.l.b16 %v613
        %v1881 = vunpack.c.h.b16 %v613
        %v1882 = vunpack.c.l.b16 %v614
        %v1883 = vunpack.c.l.b16 %v615
        %v1884 = vunpack.c.h.b16 %v615
        %v1885 = vunpack.c.l.b16 %v616
        %v1886 = vunpack.c.h.b16 %v616
        %v1887 = vunpack.c.l.b16 %v617
        %v1888 = vunpack.c.l.b16 %v618
        %v1889 = vunpack.c.h.b16 %v618
        %v1890 = vunpack.c.l.b16 %v619
        %v1891 = vunpack.c.h.b16 %v619
        %v1892 = vunpack.c.l.b16 %v620
        %v1893 = vunpack.c.l.b16 %v621
        %v1894 = vunpack.c.h.b16 %v621
        %v1895 = vunpack.c.l.b16 %v622
        %v1896 = vunpack.c.h.b16 %v622
        %v1897 = vunpack.c.l.b16 %v623
        %v1898 = vunpack.c.l.b16 %v624
        %v1899 = vunpack.c.h.b16 %v624
        %v1900 = vunpack.c.l.b16 %v625
        %v1901 = vunpack.c.h.b16 %v625
        %v1902 = vunpack.c.l.b16 %v626
        %v1903 = vunpack.c.l.b16 %v627
        %v1904 = vunpack.c.h.b16 %v627
        %v1905 = vunpack.c.l.b16 %v628
        %v1906 = vunpack.c.h.b16 %v628
        %v1907 = vunpack.c.l.b16 %v629
        %v1908 = vunpack.c.l.b16 %v630
        %v1909 = vunpack.c.h.b16 %v630
        %v1910 = vunpack.c.l.b16 %v631
        %v1911 = vunpack.c.h.b16 %v631
        %v1912 = vunpack.c.l.b16 %v632
        %v1913 = vunpack.c.l.b16 %v633
        %v1914 = vunpack.c.h.b16 %v633
        %v1915 = vunpack.c.l.b16 %v634
        %v1916 = vunpack.c.h.b16 %v634
        %v1917 = vunpack.c.l.b16 %v635
        %v1918 = vunpack.c.l.b16 %v636
        %v1919 = vunpack.c.h.b16 %v636
        %v1920 = vunpack.c.l.b16 %v637
        %v1921 = vunpack.c.h.b16 %v637
        %v1922 = vunpack.c.l.b16 %v638
        %v1923 = vunpack.c.l.b16 %v639
        %v1924 = vunpack.c.h.b16 %v639
        %v1925 = vunpack.c.l.b16 %v640
        %v1926 = vunpack.c.h.b16 %v640
        %v1927 = vunpack.c.l.b16 %v641
        %v1928 = vunpack.c.l.b16 %v642
        %v1929 = vunpack.c.h.b16 %v642
        %v1930 = vunpack.c.l.b16 %v643
        %v1931 = vunpack.c.h.b16 %v643
        %v1932 = vunpack.c.l.b16 %v644
        %v1933 = vunpack.c.l.b16 %v645
        %v1934 = vunpack.c.h.b16 %v645
        %v1935 = vunpack.c.l.b16 %v646
        %v1936 = vunpack.c.h.b16 %v646
        %v1937 = vunpack.c.l.b16 %v647
        %v1938 = vunpack.c.l.b16 %v648
        %v1939 = vunpack.c.h.b16 %v648
        %v1940 = vunpack.c.l.b16 %v649
        %v1941 = vunpack.c.h.b16 %v649
        %v1942 = vunpack.c.l.b16 %v650
        %v1943 = vunpack.c.l.b16 %v651
        %v1944 = vunpack.c.h.b16 %v651
        %v1945 = vunpack.c.l.b16 %v652
        %v1946 = vunpack.c.h.b16 %v652
        %v1947 = vunpack.c.l.b16 %v653
        %v1948 = vunpack.c.l.b16 %v654
        %v1949 = vunpack.c.h.b16 %v654
        %v1950 = vunpack.c.l.b16 %v655
        %v1951 = vunpack.c.h.b16 %v655
        %v1952 = vunpack.c.l.b16 %v656
        %v1953 = vunpack.c.l.b16 %v657
        %v1954 = vunpack.c.h.b16 %v657
        %v1955 = vunpack.c.l.b16 %v658
        %v1956 = vunpack.c.h.b16 %v658
        %v1957 = vunpack.c.l.b16 %v659
        %v1958 = vunpack.c.l.b16 %v660
        %v1959 = vunpack.c.h.b16 %v660
        %v1960 = vunpack.c.l.b16 %v661
        %v1961 = vunpack.c.h.b16 %v661
        %v1962 = vunpack.c.l.b16 %v662
        %v1963 = vunpack.c.l.b16 %v663
        %v1964 = vunpack.c.h.b16 %v663
        %v1965 = vunpack.c.l.b16 %v664
        %v1966 = vunpack.c.h.b16 %v664
        %v1967 = vunpack.c.l.b16 %v665
        %v1968 = vunpack.c.l.b16 %v666
        %v1969 = vunpack.c.h.b16 %v666
        %v1970 = vunpack.c.l.b16 %v667
        %v1971 = vunpack.c.h.b16 %v667
        %v1972 = vunpack.c.l.b16 %v668
        %v1973 = vunpack.c.l.b16 %v669
        %v1974 = vunpack.c.h.b16 %v669
        %v1975 = vunpack.c.l.b16 %v670
        %v1976 = vunpack.c.h.b16 %v670
        %v1977 = vunpack.c.l.b16 %v671
        %v1978 = vunpack.c.l.b16 %v672
        %v1979 = vunpack.c.h.b16 %v672
        %v1980 = vunpack.c.l.b16 %v673
        %v1981 = vunpack.c.h.b16 %v673
        %v1982 = vunpack.c.l.b16 %v674
        %v1983 = vunpack.c.l.b16 %v675
        %v1984 = vunpack.c.h.b16 %v675
        %v1985 = vunpack.c.l.b16 %v676
        %v1986 = vunpack.c.h.b16 %v676
        %v1987 = vunpack.c.l.b16 %v677
        %v1988 = vunpack.c.l.b16 %v678
        %v1989 = vunpack.c.h.b16 %v678
        %v1990 = vunpack.c.l.b16 %v679
        %v1991 = vunpack.c.h.b16 %v679
        %v1992 = vunpack.c.l.b16 %v680
        %v1993 = vunpack.c.l.b16 %v681
        %v1994 = vunpack.c.h.b16 %v681
        %v1995 = vunpack.c.l.b16 %v682
        %v1996 = vunpack.c.h.b16 %v682
        %v1997 = vunpack.c.l.b16 %v683
        %v1998 = vunpack.c.l.b16 %v684
        %v1999 = vunpack.c.h.b16 %v684
        %v2000 = vunpack.c.l.b16 %v685
        %v2001 = vunpack.c.h.b16 %v685
        %v2002 = vunpack.c.l.b16 %v686
        %v2003 = vunpack.c.l.b16 %v687
        %v2004 = vunpack.c.h.b16 %v687
        %v2005 = vunpack.c.l.b16 %v688
        %v2006 = vunpack.c.h.b16 %v688
        %v2007 = vunpack.c.l.b16 %v689
        %v2008 = vunpack.c.l.b16 %v690
        %v2009 = vunpack.c.h.b16 %v690
        %v2010 = vunpack.c.l.b16 %v691
        %v2011 = vunpack.c.h.b16 %v691
        %v2012 = vunpack.c.l.b16 %v692
        %v2013 = vunpack.c.l.b16 %v693
        %v2014 = vunpack.c.h.b16 %v693
        %v2015 = vunpack.c.l.b16 %v694
        %v2016 = vunpack.c.h.b16 %v694
        %v2017 = vunpack.c.l.b16 %v695
        %v2018 = vunpack.c.l.b16 %v696
        %v2019 = vunpack.c.h.b16 %v696
        %v2020 = vunpack.c.l.b16 %v697
        %v2021 = vunpack.c.h.b16 %v697
        %v2022 = vunpack.c.l.b16 %v698
        %v2023 = vunpack.c.l.b16 %v699
        %v2024 = vunpack.c.h.b16 %v699
        %v2025 = vunpack.c.l.b16 %v700
        %v2026 = vunpack.c.h.b16 %v700
        %v2027 = vunpack.c.l.b16 %v701
        %v2028 = vunpack.c.l.b16 %v702
        %v2029 = vunpack.c.h.b16 %v702
        %v2030 = vunpack.c.l.b16 %v703
        %v2031 = vunpack.c.h.b16 %v703
        %v2032 = vunpack.c.l.b16 %v704
        %v2033 = vunpack.c.l.b16 %v705
        %v2034 = vunpack.c.h.b16 %v705
        %v2035 = vunpack.c.l.b16 %v706
        %v2036 = vunpack.c.h.b16 %v706
        %v2037 = vunpack.c.l.b16 %v707
        %v2038 = vunpack.c.l.b16 %v708
        %v2039 = vunpack.c.h.b16 %v708
        %v2040 = vunpack.c.l.b16 %v709
        %v2041 = vunpack.c.h.b16 %v709
        %v2042 = vunpack.c.l.b16 %v710
        %v2043 = vunpack.c.l.b16 %v711
        %v2044 = vunpack.c.h.b16 %v711
        %v2045 = vunpack.c.l.b16 %v712
        %v2046 = vunpack.c.h.b16 %v712
        %v2047 = vunpack.c.l.b16 %v713
        %v2048 = vunpack.c.l.b16 %v714
        %v2049 = vunpack.c.h.b16 %v714
        %v2050 = vunpack.c.l.b16 %v715
        %v2051 = vunpack.c.h.b16 %v715
        %v2052 = vunpack.c.l.b16 %v716
        %v2053 = vunpack.c.l.b16 %v717
        %v2054 = vunpack.c.h.b16 %v717
        %v2055 = vunpack.c.l.b16 %v718
        %v2056 = vunpack.c.h.b16 %v718
        %v2057 = vunpack.c.l.b16 %v719
        %v2058 = vunpack.c.l.b16 %v720
        %v2059 = vunpack.c.h.b16 %v720
        %v2060 = vunpack.c.l.b16 %v721
        %v2061 = vunpack.c.h.b16 %v721
        %v2062 = vunpack.c.l.b16 %v722
        %v2063 = vunpack.c.l.b16 %v723
        %v2064 = vunpack.c.h.b16 %v723
        %v2065 = vunpack.c.l.b16 %v724
        %v2066 = vunpack.c.h.b16 %v724
        %v2067 = vunpack.c.l.b16 %v725
        %v2068 = vpack.c.b16 %v1273, %v1268
        %v2069 = vpack.c.b16 %v1274, %v1269
        %v2070 = vpack.c.b16 %v1275, %v1270
        %v2071 = vpack.c.b16 %v1276, %v1271
        %v2072 = vpack.c.b16 %v1277, %v1272
        %v2073 = vpack.c.b16 %v1283, %v1278
        %v2074 = vpack.c.b16 %v1284, %v1279
        %v2075 = vpack.c.b16 %v1285, %v1280
        %v2076 = vpack.c.b16 %v1286, %v1281
        %v2077 = vpack.c.b16 %v1287, %v1282
        %v2078 = vpack.c.b16 %v1293, %v1288
        %v2079 = vpack.c.b16 %v1294, %v1289
        %v2080 = vpack.c.b16 %v1295, %v1290
        %v2081 = vpack.c.b16 %v1296, %v1291
        %v2082 = vpack.c.b16 %v1297, %v1292
        %v2083 = vpack.c.b16 %v1303, %v1298
        %v2084 = vpack.c.b16 %v1304, %v1299
        %v2085 = vpack.c.b16 %v1305, %v1300
        %v2086 = vpack.c.b16 %v1306, %v1301
        %v2087 = vpack.c.b16 %v1307, %v1302
        %v2088 = vpack.c.b16 %v1313, %v1308
        %v2089 = vpack.c.b16 %v1314, %v1309
        %v2090 = vpack.c.b16 %v1315, %v1310
        %v2091 = vpack.c.b16 %v1316, %v1311
        %v2092 = vpack.c.b16 %v1317, %v1312
        %v2093 = vpack.c.b16 %v1323, %v1318
        %v2094 = vpack.c.b16 %v1324, %v1319
        %v2095 = vpack.c.b16 %v1325, %v1320
        %v2096 = vpack.c.b16 %v1326, %v1321
        %v2097 = vpack.c.b16 %v1327, %v1322
        %v2098 = vpack.c.b16 %v1333, %v1328
        %v2099 = vpack.c.b16 %v1334, %v1329
        %v2100 = vpack.c.b16 %v1335, %v1330
        %v2101 = vpack.c.b16 %v1336, %v1331
        %v2102 = vpack.c.b16 %v1337, %v1332
        %v2103 = vpack.c.b16 %v1343, %v1338
        %v2104 = vpack.c.b16 %v1344, %v1339
        %v2105 = vpack.c.b16 %v1345, %v1340
        %v2106 = vpack.c.b16 %v1346, %v1341
        %v2107 = vpack.c.b16 %v1347, %v1342
        %v2108 = vpack.c.b16 %v1353, %v1348
        %v2109 = vpack.c.b16 %v1354, %v1349
        %v2110 = vpack.c.b16 %v1355, %v1350
        %v2111 = vpack.c.b16 %v1356, %v1351
        %v2112 = vpack.c.b16 %v1357, %v1352
        %v2113 = vpack.c.b16 %v1363, %v1358
        %v2114 = vpack.c.b16 %v1364, %v1359
        %v2115 = vpack.c.b16 %v1365, %v1360
        %v2116 = vpack.c.b16 %v1366, %v1361
        %v2117 = vpack.c.b16 %v1367, %v1362
        %v2118 = vpack.c.b16 %v1373, %v1368
        %v2119 = vpack.c.b16 %v1374, %v1369
        %v2120 = vpack.c.b16 %v1375, %v1370
        %v2121 = vpack.c.b16 %v1376, %v1371
        %v2122 = vpack.c.b16 %v1377, %v1372
        %v2123 = vpack.c.b16 %v1383, %v1378
        %v2124 = vpack.c.b16 %v1384, %v1379
        %v2125 = vpack.c.b16 %v1385, %v1380
        %v2126 = vpack.c.b16 %v1386, %v1381
        %v2127 = vpack.c.b16 %v1387, %v1382
        %v2128 = vpack.c.b16 %v1393, %v1388
        %v2129 = vpack.c.b16 %v1394, %v1389
        %v2130 = vpack.c.b16 %v1395, %v1390
        %v2131 = vpack.c.b16 %v1396, %v1391
        %v2132 = vpack.c.b16 %v1397, %v1392
        %v2133 = vpack.c.b16 %v1403, %v1398
        %v2134 = vpack.c.b16 %v1404, %v1399
        %v2135 = vpack.c.b16 %v1405, %v1400
        %v2136 = vpack.c.b16 %v1406, %v1401
        %v2137 = vpack.c.b16 %v1407, %v1402
        %v2138 = vpack.c.b16 %v1413, %v1408
        %v2139 = vpack.c.b16 %v1414, %v1409
        %v2140 = vpack.c.b16 %v1415, %v1410
        %v2141 = vpack.c.b16 %v1416, %v1411
        %v2142 = vpack.c.b16 %v1417, %v1412
        %v2143 = vpack.c.b16 %v1423, %v1418
        %v2144 = vpack.c.b16 %v1424, %v1419
        %v2145 = vpack.c.b16 %v1425, %v1420
        %v2146 = vpack.c.b16 %v1426, %v1421
        %v2147 = vpack.c.b16 %v1427, %v1422
        %v2148 = vpack.c.b16 %v1433, %v1428
        %v2149 = vpack.c.b16 %v1434, %v1429
        %v2150 = vpack.c.b16 %v1435, %v1430
        %v2151 = vpack.c.b16 %v1436, %v1431
        %v2152 = vpack.c.b16 %v1437, %v1432
        %v2153 = vpack.c.b16 %v1443, %v1438
        %v2154 = vpack.c.b16 %v1444, %v1439
        %v2155 = vpack.c.b16 %v1445, %v1440
        %v2156 = vpack.c.b16 %v1446, %v1441
        %v2157 = vpack.c.b16 %v1447, %v1442
        %v2158 = vpack.c.b16 %v1453, %v1448
        %v2159 = vpack.c.b16 %v1454, %v1449
        %v2160 = vpack.c.b16 %v1455, %v1450
        %v2161 = vpack.c.b16 %v1456, %v1451
        %v2162 = vpack.c.b16 %v1457, %v1452
        %v2163 = vpack.c.b16 %v1463, %v1458
        %v2164 = vpack.c.b16 %v1464, %v1459
        %v2165 = vpack.c.b16 %v1465, %v1460
        %v2166 = vpack.c.b16 %v1466, %v1461
        %v2167 = vpack.c.b16 %v1467, %v1462
        %v2168 = vpack.c.b16 %v1473, %v1468
        %v2169 = vpack.c.b16 %v1474, %v1469
        %v2170 = vpack.c.b16 %v1475, %v1470
        %v2171 = vpack.c.b16 %v1476, %v1471
        %v2172 = vpack.c.b16 %v1477, %v1472
        %v2173 = vpack.c.b16 %v1483, %v1478
        %v2174 = vpack.c.b16 %v1484, %v1479
        %v2175 = vpack.c.b16 %v1485, %v1480
        %v2176 = vpack.c.b16 %v1486, %v1481
        %v2177 = vpack.c.b16 %v1487, %v1482
        %v2178 = vpack.c.b16 %v1493, %v1488
        %v2179 = vpack.c.b16 %v1494, %v1489
        %v2180 = vpack.c.b16 %v1495, %v1490
        %v2181 = vpack.c.b16 %v1496, %v1491
        %v2182 = vpack.c.b16 %v1497, %v1492
        %v2183 = vpack.c.b16 %v1503, %v1498
        %v2184 = vpack.c.b16 %v1504, %v1499
        %v2185 = vpack.c.b16 %v1505, %v1500
        %v2186 = vpack.c.b16 %v1506, %v1501
        %v2187 = vpack.c.b16 %v1507, %v1502
        %v2188 = vpack.c.b16 %v1513, %v1508
        %v2189 = vpack.c.b16 %v1514, %v1509
        %v2190 = vpack.c.b16 %v1515, %v1510
        %v2191 = vpack.c.b16 %v1516, %v1511
        %v2192 = vpack.c.b16 %v1517, %v1512
        %v2193 = vpack.c.b16 %v1523, %v1518
        %v2194 = vpack.c.b16 %v1524, %v1519
        %v2195 = vpack.c.b16 %v1525, %v1520
        %v2196 = vpack.c.b16 %v1526, %v1521
        %v2197 = vpack.c.b16 %v1527, %v1522
        %v2198 = vpack.c.b16 %v1533, %v1528
        %v2199 = vpack.c.b16 %v1534, %v1529
        %v2200 = vpack.c.b16 %v1535, %v1530
        %v2201 = vpack.c.b16 %v1536, %v1531
        %v2202 = vpack.c.b16 %v1537, %v1532
        %v2203 = vpack.c.b16 %v1543, %v1538
        %v2204 = vpack.c.b16 %v1544, %v1539
        %v2205 = vpack.c.b16 %v1545, %v1540
        %v2206 = vpack.c.b16 %v1546, %v1541
        %v2207 = vpack.c.b16 %v1547, %v1542
        %v2208 = vpack.c.b16 %v1553, %v1548
        %v2209 = vpack.c.b16 %v1554, %v1549
        %v2210 = vpack.c.b16 %v1555, %v1550
        %v2211 = vpack.c.b16 %v1556, %v1551
        %v2212 = vpack.c.b16 %v1557, %v1552
        %v2213 = vpack.c.b16 %v1563, %v1558
        %v2214 = vpack.c.b16 %v1564, %v1559
        %v2215 = vpack.c.b16 %v1565, %v1560
        %v2216 = vpack.c.b16 %v1566, %v1561
        %v2217 = vpack.c.b16 %v1567, %v1562
        %v2218 = vpack.c.b16 %v1573, %v1568
        %v2219 = vpack.c.b16 %v1574, %v1569
        %v2220 = vpack.c.b16 %v1575, %v1570
        %v2221 = vpack.c.b16 %v1576, %v1571
        %v2222 = vpack.c.b16 %v1577, %v1572
        %v2223 = vpack.c.b16 %v1583, %v1578
        %v2224 = vpack.c.b16 %v1584, %v1579
        %v2225 = vpack.c.b16 %v1585, %v1580
        %v2226 = vpack.c.b16 %v1586, %v1581
        %v2227 = vpack.c.b16 %v1587, %v1582
        %v2228 = vpack.c.b16 %v1593, %v1588
        %v2229 = vpack.c.b16 %v1594, %v1589
        %v2230 = vpack.c.b16 %v1595, %v1590
        %v2231 = vpack.c.b16 %v1596, %v1591
        %v2232 = vpack.c.b16 %v1597, %v1592
        %v2233 = vpack.c.b16 %v1603, %v1598
        %v2234 = vpack.c.b16 %v1604, %v1599
        %v2235 = vpack.c.b16 %v1605, %v1600
        %v2236 = vpack.c.b16 %v1606, %v1601
        %v2237 = vpack.c.b16 %v1607, %v1602
        %v2238 = vpack.c.b16 %v1613, %v1608
        %v2239 = vpack.c.b16 %v1614, %v1609
        %v2240 = vpack.c.b16 %v1615, %v1610
        %v2241 = vpack.c.b16 %v1616, %v1611
        %v2242 = vpack.c.b16 %v1617, %v1612
        %v2243 = vpack.c.b16 %v1623, %v1618
        %v2244 = vpack.c.b16 %v1624, %v1619
        %v2245 = vpack.c.b16 %v1625, %v1620
        %v2246 = vpack.c.b16 %v1626, %v1621
        %v2247 = vpack.c.b16 %v1627, %v1622
        %v2248 = vpack.c.b16 %v1633, %v1628
        %v2249 = vpack.c.b16 %v1634, %v1629
        %v2250 = vpack.c.b16 %v1635, %v1630
        %v2251 = vpack.c.b16 %v1636, %v1631
        %v2252 = vpack.c.b16 %v1637, %v1632
        %v2253 = vpack.c.b16 %v1643, %v1638
        %v2254 = vpack.c.b16 %v1644, %v1639
        %v2255 = vpack.c.b16 %v1645, %v1640
        %v2256 = vpack.c.b16 %v1646, %v1641
        %v2257 = vpack.c.b16 %v1647, %v1642
        %v2258 = vpack.c.b16 %v1653, %v1648
        %v2259 = vpack.c.b16 %v1654, %v1649
        %v2260 = vpack.c.b16 %v1655, %v1650
        %v2261 = vpack.c.b16 %v1656, %v1651
        %v2262 = vpack.c.b16 %v1657, %v1652
        %v2263 = vpack.c.b16 %v1663, %v1658
        %v2264 = vpack.c.b16 %v1664, %v1659
        %v2265 = vpack.c.b16 %v1665, %v1660
        %v2266 = vpack.c.b16 %v1666, %v1661
        %v2267 = vpack.c.b16 %v1667, %v1662
        %v2268 = vpack.c.b16 %v1673, %v1668
        %v2269 = vpack.c.b16 %v1674, %v1669
        %v2270 = vpack.c.b16 %v1675, %v1670
        %v2271 = vpack.c.b16 %v1676, %v1671
        %v2272 = vpack.c.b16 %v1677, %v1672
        %v2273 = vpack.c.b16 %v1683, %v1678
        %v2274 = vpack.c.b16 %v1684, %v1679
        %v2275 = vpack.c.b16 %v1685, %v1680
        %v2276 = vpack.c.b16 %v1686, %v1681
        %v2277 = vpack.c.b16 %v1687, %v1682
        %v2278 = vpack.c.b16 %v1693, %v1688
        %v2279 = vpack.c.b16 %v1694, %v1689
        %v2280 = vpack.c.b16 %v1695, %v1690
        %v2281 = vpack.c.b16 %v1696, %v1691
        %v2282 = vpack.c.b16 %v1697, %v1692
        %v2283 = vpack.c.b16 %v1703, %v1698
        %v2284 = vpack.c.b16 %v1704, %v1699
        %v2285 = vpack.c.b16 %v1705, %v1700
        %v2286 = vpack.c.b16 %v1706, %v1701
        %v2287 = vpack.c.b16 %v1707, %v1702
        %v2288 = vpack.c.b16 %v1713, %v1708
        %v2289 = vpack.c.b16 %v1714, %v1709
        %v2290 = vpack.c.b16 %v1715, %v1710
        %v2291 = vpack.c.b16 %v1716, %v1711
        %v2292 = vpack.c.b16 %v1717, %v1712
        %v2293 = vpack.c.b16 %v1723, %v1718
        %v2294 = vpack.c.b16 %v1724, %v1719
        %v2295 = vpack.c.b16 %v1725, %v1720
        %v2296 = vpack.c.b16 %v1726, %v1721
        %v2297 = vpack.c.b16 %v1727, %v1722
        %v2298 = vpack.c.b16 %v1733, %v1728
        %v2299 = vpack.c.b16 %v1734, %v1729
        %v2300 = vpack.c.b16 %v1735, %v1730
        %v2301 = vpack.c.b16 %v1736, %v1731
        %v2302 = vpack.c.b16 %v1737, %v1732
        %v2303 = vpack.c.b16 %v1743, %v1738
        %v2304 = vpack.c.b16 %v1744, %v1739
        %v2305 = vpack.c.b16 %v1745, %v1740
        %v2306 = vpack.c.b16 %v1746, %v1741
        %v2307 = vpack.c.b16 %v1747, %v1742
        %v2308 = vpack.c.b16 %v1753, %v1748
        %v2309 = vpack.c.b16 %v1754, %v1749
        %v2310 = vpack.c.b16 %v1755, %v1750
        %v2311 = vpack.c.b16 %v1756, %v1751
        %v2312 = vpack.c.b16 %v1757, %v1752
        %v2313 = vpack.c.b16 %v1763, %v1758
        %v2314 = vpack.c.b16 %v1764, %v1759
        %v2315 = vpack.c.b16 %v1765, %v1760
        %v2316 = vpack.c.b16 %v1766, %v1761
        %v2317 = vpack.c.b16 %v1767, %v1762
        %v2318 = vpack.c.b16 %v1773, %v1768
        %v2319 = vpack.c.b16 %v1774, %v1769
        %v2320 = vpack.c.b16 %v1775, %v1770
        %v2321 = vpack.c.b16 %v1776, %v1771
        %v2322 = vpack.c.b16 %v1777, %v1772
        %v2323 = vpack.c.b16 %v1783, %v1778
        %v2324 = vpack.c.b16 %v1784, %v1779
        %v2325 = vpack.c.b16 %v1785, %v1780
        %v2326 = vpack.c.b16 %v1786, %v1781
        %v2327 = vpack.c.b16 %v1787, %v1782
        %v2328 = vpack.c.b16 %v1793, %v1788
        %v2329 = vpack.c.b16 %v1794, %v1789
        %v2330 = vpack.c.b16 %v1795, %v1790
        %v2331 = vpack.c.b16 %v1796, %v1791
        %v2332 = vpack.c.b16 %v1797, %v1792
        %v2333 = vpack.c.b16 %v1803, %v1798
        %v2334 = vpack.c.b16 %v1804, %v1799
        %v2335 = vpack.c.b16 %v1805, %v1800
        %v2336 = vpack.c.b16 %v1806, %v1801
        %v2337 = vpack.c.b16 %v1807, %v1802
        %v2338 = vpack.c.b16 %v1813, %v1808
        %v2339 = vpack.c.b16 %v1814, %v1809
        %v2340 = vpack.c.b16 %v1815, %v1810
        %v2341 = vpack.c.b16 %v1816, %v1811
        %v2342 = vpack.c.b16 %v1817, %v1812
        %v2343 = vpack.c.b16 %v1823, %v1818
        %v2344 = vpack.c.b16 %v1824, %v1819
        %v2345 = vpack.c.b16 %v1825, %v1820
        %v2346 = vpack.c.b16 %v1826, %v1821
        %v2347 = vpack.c.b16 %v1827, %v1822
        %v2348 = vpack.c.b16 %v1833, %v1828
        %v2349 = vpack.c.b16 %v1834, %v1829
        %v2350 = vpack.c.b16 %v1835, %v1830
        %v2351 = vpack.c.b16 %v1836, %v1831
        %v2352 = vpack.c.b16 %v1837, %v1832
        %v2353 = vpack.c.b16 %v1843, %v1838
        %v2354 = vpack.c.b16 %v1844, %v1839
        %v2355 = vpack.c.b16 %v1845, %v1840
        %v2356 = vpack.c.b16 %v1846, %v1841
        %v2357 = vpack.c.b16 %v1847, %v1842
        %v2358 = vpack.c.b16 %v1853, %v1848
        %v2359 = vpack.c.b16 %v1854, %v1849
        %v2360 = vpack.c.b16 %v1855, %v1850
        %v2361 = vpack.c.b16 %v1856, %v1851
        %v2362 = vpack.c.b16 %v1857, %v1852
        %v2363 = vpack.c.b16 %v1863, %v1858
        %v2364 = vpack.c.b16 %v1864, %v1859
        %v2365 = vpack.c.b16 %v1865, %v1860
        %v2366 = vpack.c.b16 %v1866, %v1861
        %v2367 = vpack.c.b16 %v1867, %v1862
        %v2368 = vpack.c.b16 %v1873, %v1868
        %v2369 = vpack.c.b16 %v1874, %v1869
        %v2370 = vpack.c.b16 %v1875, %v1870
        %v2371 = vpack.c.b16 %v1876, %v1871
        %v2372 = vpack.c.b16 %v1877, %v1872
        %v2373 = vpack.c.b16 %v1883, %v1878
        %v2374 = vpack.c.b16 %v1884, %v1879
        %v2375 = vpack.c.b16 %v1885, %v1880
        %v2376 = vpack.c.b16 %v1886, %v1881
        %v2377 = vpack.c.b16 %v1887, %v1882
        %v2378 = vpack.c.b16 %v1893, %v1888
        %v2379 = vpack.c.b16 %v1894, %v1889
        %v2380 = vpack.c.b16 %v1895, %v1890
        %v2381 = vpack.c.b16 %v1896, %v1891
        %v2382 = vpack.c.b16 %v1897, %v1892
        %v2383 = vpack.c.b16 %v1903, %v1898
        %v2384 = vpack.c.b16 %v1904, %v1899
        %v2385 = vpack.c.b16 %v1905, %v1900
        %v2386 = vpack.c.b16 %v1906, %v1901
        %v2387 = vpack.c.b16 %v1907, %v1902
        %v2388 = vpack.c.b16 %v1913, %v1908
        %v2389 = vpack.c.b16 %v1914, %v1909
        %v2390 = vpack.c.b16 %v1915, %v1910
        %v2391 = vpack.c.b16 %v1916, %v1911
        %v2392 = vpack.c.b16 %v1917, %v1912
        %v2393 = vpack.c.b16 %v1923, %v1918
        %v2394 = vpack.c.b16 %v1924, %v1919
        %v2395 = vpack.c.b16 %v1925, %v1920
        %v2396 = vpack.c.b16 %v1926, %v1921
        %v2397 = vpack.c.b16 %v1927, %v1922
        %v2398 = vpack.c.b16 %v1933, %v1928
        %v2399 = vpack.c.b16 %v1934, %v1929
        %v2400 = vpack.c.b16 %v1935, %v1930
        %v2401 = vpack.c.b16 %v1936, %v1931
        %v2402 = vpack.c.b16 %v1937, %v1932
        %v2403 = vpack.c.b16 %v1943, %v1938
        %v2404 = vpack.c.b16 %v1944, %v1939
        %v2405 = vpack.c.b16 %v1945, %v1940
        %v2406 = vpack.c.b16 %v1946, %v1941
        %v2407 = vpack.c.b16 %v1947, %v1942
        %v2408 = vpack.c.b16 %v1953, %v1948
        %v2409 = vpack.c.b16 %v1954, %v1949
        %v2410 = vpack.c.b16 %v1955, %v1950
        %v2411 = vpack.c.b16 %v1956, %v1951
        %v2412 = vpack.c.b16 %v1957, %v1952
        %v2413 = vpack.c.b16 %v1963, %v1958
        %v2414 = vpack.c.b16 %v1964, %v1959
        %v2415 = vpack.c.b16 %v1965, %v1960
        %v2416 = vpack.c.b16 %v1966, %v1961
        %v2417 = vpack.c.b16 %v1967, %v1962
        %v2418 = vpack.c.b16 %v1973, %v1968
        %v2419 = vpack.c.b16 %v1974, %v1969
        %v2420 = vpack.c.b16 %v1975, %v1970
        %v2421 = vpack.c.b16 %v1976, %v1971
        %v2422 = vpack.c.b16 %v1977, %v1972
        %v2423 = vpack.c.b16 %v1983, %v1978
        %v2424 = vpack.c.b16 %v1984, %v1979
        %v2425 = vpack.c.b16 %v1985, %v1980
        %v2426 = vpack.c.b16 %v1986, %v1981
        %v2427 = vpack.c.b16 %v1987, %v1982
        %v2428 = vpack.c.b16 %v1993, %v1988
        %v2429 = vpack.c.b16 %v1994, %v1989
        %v2430 = vpack.c.b16 %v1995, %v1990
        %v2431 = vpack.c.b16 %v1996, %v1991
        %v2432 = vpack.c.b16 %v1997, %v1992
        %v2433 = vpack.c.b16 %v2003, %v1998
        %v2434 = vpack.c.b16 %v2004, %v1999
        %v2435 = vpack.c.b16 %v2005, %v2000
        %v2436 = vpack.c.b16 %v2006, %v2001
        %v2437 = vpack.c.b16 %v2007, %v2002
        %v2438 = vpack.c.b16 %v2013, %v2008
        %v2439 = vpack.c.b16 %v2014, %v2009
        %v2440 = vpack.c.b16 %v2015, %v2010
        %v2441 = vpack.c.b16 %v2016, %v2011
        %v2442 = vpack.c.b16 %v2017, %v2012
        %v2443 = vpack.c.b16 %v2023, %v2018
        %v2444 = vpack.c.b16 %v2024, %v2019
        %v2445 = vpack.c.b16 %v2025, %v2020
        %v2446 = vpack.c.b16 %v2026, %v2021
        %v2447 = vpack.c.b16 %v2027, %v2022
        %v2448 = vpack.c.b16 %v2033, %v2028
        %v2449 = vpack.c.b16 %v2034, %v2029
        %v2450 = vpack.c.b16 %v2035, %v2030
        %v2451 = vpack.c.b16 %v2036, %v2031
        %v2452 = vpack.c.b16 %v2037, %v2032
        %v2453 = vpack.c.b16 %v2043, %v2038
        %v2454 = vpack.c.b16 %v2044, %v2039
        %v2455 = vpack.c.b16 %v2045, %v2040
        %v2456 = vpack.c.b16 %v2046, %v2041
        %v2457 = vpack.c.b16 %v2047, %v2042
        %v2458 = vpack.c.b16 %v2053, %v2048
        %v2459 = vpack.c.b16 %v2054, %v2049
        %v2460 = vpack.c.b16 %v2055, %v2050
        %v2461 = vpack.c.b16 %v2056, %v2051
        %v2462 = vpack.c.b16 %v2057, %v2052
        %v2463 = vpack.c.b16 %v2063, %v2058
        %v2464 = vpack.c.b16 %v2064, %v2059
        %v2465 = vpack.c.b16 %v2065, %v2060
        %v2466 = vpack.c.b16 %v2066, %v2061
        %v2467 = vpack.c.b16 %v2067, %v2062
        %2868 = vmatprep.subr.bf16.mxu0 %v2069
        %2869 = vmatpush1.bf16.msra.mxu0 %v2068
        %2870 = vmatprep.subr.bf16.mxu0 %v2074
        %2871 = vmatpush1.bf16.msra.mxu0 %v2073
        %2872 = vmatprep.subr.bf16.mxu0 %v2079
        %2873 = vmatpush1.bf16.msra.mxu0 %v2078
        %2874 = vmatprep.subr.bf16.mxu0 %v2084
        %2875 = vmatpush1.bf16.msra.mxu0 %v2083
        %2876 = vmatprep.subr.bf16.mxu0 %v2089
        %2877 = vmatpush1.bf16.msra.mxu0 %v2088
        %2878 = vmatprep.subr.bf16.mxu0 %v2094
        %2879 = vmatpush1.bf16.msra.mxu0 %v2093
        %2880 = vmatprep.subr.bf16.mxu0 %v2099
        %2881 = vmatpush1.bf16.msra.mxu0 %v2098
        %2882 = vmatprep.subr.bf16.mxu0 %v2104
        %2883 = vmatpush1.bf16.msra.mxu0 %v2103
        %2884 = vmatprep.subr.bf16.mxu0 %v2109
        %2885 = vmatpush1.bf16.msra.mxu0 %v2108
        %2886 = vmatprep.subr.bf16.mxu0 %v2114
        %2887 = vmatpush1.bf16.msra.mxu0 %v2113
        %2888 = vmatprep.subr.bf16.mxu0 %v2119
        %2889 = vmatpush1.bf16.msra.mxu0 %v2118
        %2890 = vmatprep.subr.bf16.mxu0 %v2124
        %2891 = vmatpush1.bf16.msra.mxu0 %v2123
        %2892 = vmatprep.subr.bf16.mxu0 %v2129
        %2893 = vmatpush1.bf16.msra.mxu0 %v2128
        %2894 = vmatprep.subr.bf16.mxu0 %v2134
        %2895 = vmatpush1.bf16.msra.mxu0 %v2133
        %2896 = vmatprep.subr.bf16.mxu0 %v2139
        %2897 = vmatpush1.bf16.msra.mxu0 %v2138
        %2898 = vmatprep.subr.bf16.mxu0 %v2144
        %2899 = vmatpush1.bf16.msra.mxu0 %v2143
        %2900 = vmatprep.mubr.bf16.mxu0 %v769
        %2901 = vmatmul.mubr.bf16.gmra.mrb[0].mxu0 %v768
        %v2902 = vpop.f32.mrb[0].mxu0
        %v2903 = vadd.f32 %v731, %v2902
        %v2904 = vpop.f32.mrb[0].mxu0
        %v2905 = vadd.f32 %v735, %v2904
        %v2906 = vpop.f32.mrb[0].mxu0
        %v2907 = vpop.f32.mrb[0].mxu0
        %2908 = vdwg.mxu0
        %2909 = vmatprep.subr.bf16.mxu0 %v2149
        %2910 = vmatpush1.bf16.msra.mxu0 %v2148
        %2911 = vmatprep.subr.bf16.mxu0 %v2154
        %2912 = vmatpush1.bf16.msra.mxu0 %v2153
        %2913 = vmatprep.subr.bf16.mxu0 %v2159
        %2914 = vmatpush1.bf16.msra.mxu0 %v2158
        %2915 = vmatprep.subr.bf16.mxu0 %v2164
        %2916 = vmatpush1.bf16.msra.mxu0 %v2163
        %2917 = vmatprep.subr.bf16.mxu0 %v2169
        %2918 = vmatpush1.bf16.msra.mxu0 %v2168
        %2919 = vmatprep.subr.bf16.mxu0 %v2174
        %2920 = vmatpush1.bf16.msra.mxu0 %v2173
        %2921 = vmatprep.subr.bf16.mxu0 %v2179
        %2922 = vmatpush1.bf16.msra.mxu0 %v2178
        %2923 = vmatprep.subr.bf16.mxu0 %v2184
        %2924 = vmatpush1.bf16.msra.mxu0 %v2183
        %2925 = vmatprep.subr.bf16.mxu0 %v2189
        %2926 = vmatpush1.bf16.msra.mxu0 %v2188
        %2927 = vmatprep.subr.bf16.mxu0 %v2194
        %2928 = vmatpush1.bf16.msra.mxu0 %v2193
        %2929 = vmatprep.subr.bf16.mxu0 %v2199
        %2930 = vmatpush1.bf16.msra.mxu0 %v2198
        %2931 = vmatprep.subr.bf16.mxu0 %v2204
        %2932 = vmatpush1.bf16.msra.mxu0 %v2203
        %2933 = vmatprep.subr.bf16.mxu0 %v2209
        %2934 = vmatpush1.bf16.msra.mxu0 %v2208
        %2935 = vmatprep.subr.bf16.mxu0 %v2214
        %2936 = vmatpush1.bf16.msra.mxu0 %v2213
        %2937 = vmatprep.subr.bf16.mxu0 %v2219
        %2938 = vmatpush1.bf16.msra.mxu0 %v2218
        %2939 = vmatprep.subr.bf16.mxu0 %v2224
        %2940 = vmatpush1.bf16.msra.mxu0 %v2223
        %2941 = vmatprep.mubr.bf16.mxu0 %v771
        %2942 = vmatmul.mubr.bf16.gmra.mrb[0].mxu0 %v770
        %v2943 = vpop.f32.mrb[0].mxu0
        %v2944 = vadd.f32 %v2903, %v2943
        %v2945 = vpop.f32.mrb[0].mxu0
        %v2946 = vadd.f32 %v2905, %v2945
        %v2947 = vpop.f32.mrb[0].mxu0
        %v2948 = vpop.f32.mrb[0].mxu0
        %2949 = vdwg.mxu0
        %2950 = vmatprep.subr.bf16.mxu0 %v2229
        %2951 = vmatpush1.bf16.msra.mxu0 %v2228
        %2952 = vmatprep.subr.bf16.mxu0 %v2234
        %2953 = vmatpush1.bf16.msra.mxu0 %v2233
        %2954 = vmatprep.subr.bf16.mxu0 %v2239
        %2955 = vmatpush1.bf16.msra.mxu0 %v2238
        %2956 = vmatprep.subr.bf16.mxu0 %v2244
        %2957 = vmatpush1.bf16.msra.mxu0 %v2243
        %2958 = vmatprep.subr.bf16.mxu0 %v2249
        %2959 = vmatpush1.bf16.msra.mxu0 %v2248
        %2960 = vmatprep.subr.bf16.mxu0 %v2254
        %2961 = vmatpush1.bf16.msra.mxu0 %v2253
        %2962 = vmatprep.subr.bf16.mxu0 %v2259
        %2963 = vmatpush1.bf16.msra.mxu0 %v2258
        %2964 = vmatprep.subr.bf16.mxu0 %v2264
        %2965 = vmatpush1.bf16.msra.mxu0 %v2263
        %2966 = vmatprep.subr.bf16.mxu0 %v2269
        %2967 = vmatpush1.bf16.msra.mxu0 %v2268
        %2968 = vmatprep.subr.bf16.mxu0 %v2274
        %2969 = vmatpush1.bf16.msra.mxu0 %v2273
        %2970 = vmatprep.subr.bf16.mxu0 %v2279
        %2971 = vmatpush1.bf16.msra.mxu0 %v2278
        %2972 = vmatprep.subr.bf16.mxu0 %v2284
        %2973 = vmatpush1.bf16.msra.mxu0 %v2283
        %2974 = vmatprep.subr.bf16.mxu0 %v2289
        %2975 = vmatpush1.bf16.msra.mxu0 %v2288
        %2976 = vmatprep.subr.bf16.mxu0 %v2294
        %2977 = vmatpush1.bf16.msra.mxu0 %v2293
        %2978 = vmatprep.subr.bf16.mxu0 %v2299
        %2979 = vmatpush1.bf16.msra.mxu0 %v2298
        %2980 = vmatprep.subr.bf16.mxu0 %v2304
        %2981 = vmatpush1.bf16.msra.mxu0 %v2303
        %2982 = vmatprep.mubr.bf16.mxu0 %v773
        %2983 = vmatmul.mubr.bf16.gmra.mrb[0].mxu0 %v772
        %v2984 = vpop.f32.mrb[0].mxu0
        %v2985 = vadd.f32 %v2944, %v2984
        %v2986 = vpop.f32.mrb[0].mxu0
        %v2987 = vadd.f32 %v2946, %v2986
        %v2988 = vpop.f32.mrb[0].mxu0
        %v2989 = vpop.f32.mrb[0].mxu0
        %2990 = vdwg.mxu0
        %2991 = vmatprep.subr.bf16.mxu0 %v2309
        %2992 = vmatpush1.bf16.msra.mxu0 %v2308
        %2993 = vmatprep.subr.bf16.mxu0 %v2314
        %2994 = vmatpush1.bf16.msra.mxu0 %v2313
        %2995 = vmatprep.subr.bf16.mxu0 %v2319
        %2996 = vmatpush1.bf16.msra.mxu0 %v2318
        %2997 = vmatprep.subr.bf16.mxu0 %v2324
        %2998 = vmatpush1.bf16.msra.mxu0 %v2323
        %2999 = vmatprep.subr.bf16.mxu0 %v2329
        %3000 = vmatpush1.bf16.msra.mxu0 %v2328
        %3001 = vmatprep.subr.bf16.mxu0 %v2334
        %3002 = vmatpush1.bf16.msra.mxu0 %v2333
        %3003 = vmatprep.subr.bf16.mxu0 %v2339
        %3004 = vmatpush1.bf16.msra.mxu0 %v2338
        %3005 = vmatprep.subr.bf16.mxu0 %v2344
        %3006 = vmatpush1.bf16.msra.mxu0 %v2343
        %3007 = vmatprep.subr.bf16.mxu0 %v2349
        %3008 = vmatpush1.bf16.msra.mxu0 %v2348
        %3009 = vmatprep.subr.bf16.mxu0 %v2354
        %3010 = vmatpush1.bf16.msra.mxu0 %v2353
        %3011 = vmatprep.subr.bf16.mxu0 %v2359
        %3012 = vmatpush1.bf16.msra.mxu0 %v2358
        %3013 = vmatprep.subr.bf16.mxu0 %v2364
        %3014 = vmatpush1.bf16.msra.mxu0 %v2363
        %3015 = vmatprep.subr.bf16.mxu0 %v2369
        %3016 = vmatpush1.bf16.msra.mxu0 %v2368
        %3017 = vmatprep.subr.bf16.mxu0 %v2374
        %3018 = vmatpush1.bf16.msra.mxu0 %v2373
        %3019 = vmatprep.subr.bf16.mxu0 %v2379
        %3020 = vmatpush1.bf16.msra.mxu0 %v2378
        %3021 = vmatprep.subr.bf16.mxu0 %v2384
        %3022 = vmatpush1.bf16.msra.mxu0 %v2383
        %3023 = vmatprep.mubr.bf16.mxu0 %v775
        %3024 = vmatmul.mubr.bf16.gmra.mrb[0].mxu0 %v774
        %v3025 = vpop.f32.mrb[0].mxu0
        %v3026 = vadd.f32 %v2985, %v3025
        %v3027 = vpop.f32.mrb[0].mxu0
        %v3028 = vadd.f32 %v2987, %v3027
        %v3029 = vpop.f32.mrb[0].mxu0
        %v3030 = vpop.f32.mrb[0].mxu0
        %3031 = vdwg.mxu0
        %3032 = vmatprep.subr.bf16.mxu0 %v2389
        %3033 = vmatpush1.bf16.msra.mxu0 %v2388
        %3034 = vmatprep.subr.bf16.mxu0 %v2394
        %3035 = vmatpush1.bf16.msra.mxu0 %v2393
        %3036 = vmatprep.subr.bf16.mxu0 %v2399
        %3037 = vmatpush1.bf16.msra.mxu0 %v2398
        %3038 = vmatprep.subr.bf16.mxu0 %v2404
        %3039 = vmatpush1.bf16.msra.mxu0 %v2403
        %3040 = vmatprep.subr.bf16.mxu0 %v2409
        %3041 = vmatpush1.bf16.msra.mxu0 %v2408
        %3042 = vmatprep.subr.bf16.mxu0 %v2414
        %3043 = vmatpush1.bf16.msra.mxu0 %v2413
        %3044 = vmatprep.subr.bf16.mxu0 %v2419
        %3045 = vmatpush1.bf16.msra.mxu0 %v2418
        %3046 = vmatprep.subr.bf16.mxu0 %v2424
        %3047 = vmatpush1.bf16.msra.mxu0 %v2423
        %3048 = vmatprep.subr.bf16.mxu0 %v2429
        %3049 = vmatpush1.bf16.msra.mxu0 %v2428
        %3050 = vmatprep.subr.bf16.mxu0 %v2434
        %3051 = vmatpush1.bf16.msra.mxu0 %v2433
        %3052 = vmatprep.subr.bf16.mxu0 %v2439
        %3053 = vmatpush1.bf16.msra.mxu0 %v2438
        %3054 = vmatprep.subr.bf16.mxu0 %v2444
        %3055 = vmatpush1.bf16.msra.mxu0 %v2443
        %3056 = vmatprep.subr.bf16.mxu0 %v2449
        %3057 = vmatpush1.bf16.msra.mxu0 %v2448
        %3058 = vmatprep.subr.bf16.mxu0 %v2454
        %3059 = vmatpush1.bf16.msra.mxu0 %v2453
        %3060 = vmatprep.subr.bf16.mxu0 %v2459
        %3061 = vmatpush1.bf16.msra.mxu0 %v2458
        %3062 = vmatprep.subr.bf16.mxu0 %v2464
        %3063 = vmatpush1.bf16.msra.mxu0 %v2463
        %3064 = vmatprep.mubr.bf16.mxu0 %v777
        %3065 = vmatmul.mubr.bf16.gmra.mrb[0].mxu0 %v776
        %v3066 = vpop.f32.mrb[0].mxu0
        %v3067 = vadd.f32 %v3026, %v3066
        %v3068 = vpop.f32.mrb[0].mxu0
        %v3069 = vadd.f32 %v3028, %v3068
        %v3070 = vpop.f32.mrb[0].mxu0
        %v3071 = vpop.f32.mrb[0].mxu0
        %3072 = vdwg.mxu0
        %3073 = vmatprep.subr.bf16.mxu0 %v2071
        %3074 = vmatpush1.bf16.msra.mxu0 %v2070
        %3075 = vmatprep.subr.bf16.mxu0 %v2076
        %3076 = vmatpush1.bf16.msra.mxu0 %v2075
        %3077 = vmatprep.subr.bf16.mxu0 %v2081
        %3078 = vmatpush1.bf16.msra.mxu0 %v2080
        %3079 = vmatprep.subr.bf16.mxu0 %v2086
        %3080 = vmatpush1.bf16.msra.mxu0 %v2085
        %3081 = vmatprep.subr.bf16.mxu0 %v2091
        %3082 = vmatpush1.bf16.msra.mxu0 %v2090
        %3083 = vmatprep.subr.bf16.mxu0 %v2096
        %3084 = vmatpush1.bf16.msra.mxu0 %v2095
        %3085 = vmatprep.subr.bf16.mxu0 %v2101
        %3086 = vmatpush1.bf16.msra.mxu0 %v2100
        %3087 = vmatprep.subr.bf16.mxu0 %v2106
        %3088 = vmatpush1.bf16.msra.mxu0 %v2105
        %3089 = vmatprep.subr.bf16.mxu0 %v2111
        %3090 = vmatpush1.bf16.msra.mxu0 %v2110
        %3091 = vmatprep.subr.bf16.mxu0 %v2116
        %3092 = vmatpush1.bf16.msra.mxu0 %v2115
        %3093 = vmatprep.subr.bf16.mxu0 %v2121
        %3094 = vmatpush1.bf16.msra.mxu0 %v2120
        %3095 = vmatprep.subr.bf16.mxu0 %v2126
        %3096 = vmatpush1.bf16.msra.mxu0 %v2125
        %3097 = vmatprep.subr.bf16.mxu0 %v2131
        %3098 = vmatpush1.bf16.msra.mxu0 %v2130
        %3099 = vmatprep.subr.bf16.mxu0 %v2136
        %3100 = vmatpush1.bf16.msra.mxu0 %v2135
        %3101 = vmatprep.subr.bf16.mxu0 %v2141
        %3102 = vmatpush1.bf16.msra.mxu0 %v2140
        %3103 = vmatprep.subr.bf16.mxu0 %v2146
        %3104 = vmatpush1.bf16.msra.mxu0 %v2145
        %3105 = vmatprep.mubr.bf16.mxu0 %v769
        %3106 = vmatmul.mubr.bf16.gmra.mrb[0].mxu0 %v768
        %v3107 = vpop.f32.mrb[0].mxu0
        %v3108 = vadd.f32 %v739, %v3107
        %v3109 = vpop.f32.mrb[0].mxu0
        %v3110 = vadd.f32 %v743, %v3109
        %v3111 = vpop.f32.mrb[0].mxu0
        %v3112 = vpop.f32.mrb[0].mxu0
        %3113 = vdwg.mxu0
        %3114 = vmatprep.subr.bf16.mxu0 %v2151
        %3115 = vmatpush1.bf16.msra.mxu0 %v2150
        %3116 = vmatprep.subr.bf16.mxu0 %v2156
        %3117 = vmatpush1.bf16.msra.mxu0 %v2155
        %3118 = vmatprep.subr.bf16.mxu0 %v2161
        %3119 = vmatpush1.bf16.msra.mxu0 %v2160
        %3120 = vmatprep.subr.bf16.mxu0 %v2166
        %3121 = vmatpush1.bf16.msra.mxu0 %v2165
        %3122 = vmatprep.subr.bf16.mxu0 %v2171
        %3123 = vmatpush1.bf16.msra.mxu0 %v2170
        %3124 = vmatprep.subr.bf16.mxu0 %v2176
        %3125 = vmatpush1.bf16.msra.mxu0 %v2175
        %3126 = vmatprep.subr.bf16.mxu0 %v2181
        %3127 = vmatpush1.bf16.msra.mxu0 %v2180
        %3128 = vmatprep.subr.bf16.mxu0 %v2186
        %3129 = vmatpush1.bf16.msra.mxu0 %v2185
        %3130 = vmatprep.subr.bf16.mxu0 %v2191
        %3131 = vmatpush1.bf16.msra.mxu0 %v2190
        %3132 = vmatprep.subr.bf16.mxu0 %v2196
        %3133 = vmatpush1.bf16.msra.mxu0 %v2195
        %3134 = vmatprep.subr.bf16.mxu0 %v2201
        %3135 = vmatpush1.bf16.msra.mxu0 %v2200
        %3136 = vmatprep.subr.bf16.mxu0 %v2206
        %3137 = vmatpush1.bf16.msra.mxu0 %v2205
        %3138 = vmatprep.subr.bf16.mxu0 %v2211
        %3139 = vmatpush1.bf16.msra.mxu0 %v2210
        %3140 = vmatprep.subr.bf16.mxu0 %v2216
        %3141 = vmatpush1.bf16.msra.mxu0 %v2215
        %3142 = vmatprep.subr.bf16.mxu0 %v2221
        %3143 = vmatpush1.bf16.msra.mxu0 %v2220
        %3144 = vmatprep.subr.bf16.mxu0 %v2226
        %3145 = vmatpush1.bf16.msra.mxu0 %v2225
        %3146 = vmatprep.mubr.bf16.mxu0 %v771
        %3147 = vmatmul.mubr.bf16.gmra.mrb[0].mxu0 %v770
        %v3148 = vpop.f32.mrb[0].mxu0
        %v3149 = vadd.f32 %v3108, %v3148
        %v3150 = vpop.f32.mrb[0].mxu0
        %v3151 = vadd.f32 %v3110, %v3150
        %v3152 = vpop.f32.mrb[0].mxu0
        %v3153 = vpop.f32.mrb[0].mxu0
        %3154 = vdwg.mxu0
        %3155 = vmatprep.subr.bf16.mxu0 %v2231
        %3156 = vmatpush1.bf16.msra.mxu0 %v2230
        %3157 = vmatprep.subr.bf16.mxu0 %v2236
        %3158 = vmatpush1.bf16.msra.mxu0 %v2235
        %3159 = vmatprep.subr.bf16.mxu0 %v2241
        %3160 = vmatpush1.bf16.msra.mxu0 %v2240
        %3161 = vmatprep.subr.bf16.mxu0 %v2246
        %3162 = vmatpush1.bf16.msra.mxu0 %v2245
        %3163 = vmatprep.subr.bf16.mxu0 %v2251
        %3164 = vmatpush1.bf16.msra.mxu0 %v2250
        %3165 = vmatprep.subr.bf16.mxu0 %v2256
        %3166 = vmatpush1.bf16.msra.mxu0 %v2255
        %3167 = vmatprep.subr.bf16.mxu0 %v2261
        %3168 = vmatpush1.bf16.msra.mxu0 %v2260
        %3169 = vmatprep.subr.bf16.mxu0 %v2266
        %3170 = vmatpush1.bf16.msra.mxu0 %v2265
        %3171 = vmatprep.subr.bf16.mxu0 %v2271
        %3172 = vmatpush1.bf16.msra.mxu0 %v2270
        %3173 = vmatprep.subr.bf16.mxu0 %v2276
        %3174 = vmatpush1.bf16.msra.mxu0 %v2275
        %3175 = vmatprep.subr.bf16.mxu0 %v2281
        %3176 = vmatpush1.bf16.msra.mxu0 %v2280
        %3177 = vmatprep.subr.bf16.mxu0 %v2286
        %3178 = vmatpush1.bf16.msra.mxu0 %v2285
        %3179 = vmatprep.subr.bf16.mxu0 %v2291
        %3180 = vmatpush1.bf16.msra.mxu0 %v2290
        %3181 = vmatprep.subr.bf16.mxu0 %v2296
        %3182 = vmatpush1.bf16.msra.mxu0 %v2295
        %3183 = vmatprep.subr.bf16.mxu0 %v2301
        %3184 = vmatpush1.bf16.msra.mxu0 %v2300
        %3185 = vmatprep.subr.bf16.mxu0 %v2306
        %3186 = vmatpush1.bf16.msra.mxu0 %v2305
        %3187 = vmatprep.mubr.bf16.mxu0 %v773
        %3188 = vmatmul.mubr.bf16.gmra.mrb[0].mxu0 %v772
        %v3189 = vpop.f32.mrb[0].mxu0
        %v3190 = vadd.f32 %v3149, %v3189
        %v3191 = vpop.f32.mrb[0].mxu0
        %v3192 = vadd.f32 %v3151, %v3191
        %v3193 = vpop.f32.mrb[0].mxu0
        %v3194 = vpop.f32.mrb[0].mxu0
        %3195 = vdwg.mxu0
        %3196 = vmatprep.subr.bf16.mxu0 %v2311
        %3197 = vmatpush1.bf16.msra.mxu0 %v2310
        %3198 = vmatprep.subr.bf16.mxu0 %v2316
        %3199 = vmatpush1.bf16.msra.mxu0 %v2315
        %3200 = vmatprep.subr.bf16.mxu0 %v2321
        %3201 = vmatpush1.bf16.msra.mxu0 %v2320
        %3202 = vmatprep.subr.bf16.mxu0 %v2326
        %3203 = vmatpush1.bf16.msra.mxu0 %v2325
        %3204 = vmatprep.subr.bf16.mxu0 %v2331
        %3205 = vmatpush1.bf16.msra.mxu0 %v2330
        %3206 = vmatprep.subr.bf16.mxu0 %v2336
        %3207 = vmatpush1.bf16.msra.mxu0 %v2335
        %3208 = vmatprep.subr.bf16.mxu0 %v2341
        %3209 = vmatpush1.bf16.msra.mxu0 %v2340
        %3210 = vmatprep.subr.bf16.mxu0 %v2346
        %3211 = vmatpush1.bf16.msra.mxu0 %v2345
        %3212 = vmatprep.subr.bf16.mxu0 %v2351
        %3213 = vmatpush1.bf16.msra.mxu0 %v2350
        %3214 = vmatprep.subr.bf16.mxu0 %v2356
        %3215 = vmatpush1.bf16.msra.mxu0 %v2355
        %3216 = vmatprep.subr.bf16.mxu0 %v2361
        %3217 = vmatpush1.bf16.msra.mxu0 %v2360
        %3218 = vmatprep.subr.bf16.mxu0 %v2366
        %3219 = vmatpush1.bf16.msra.mxu0 %v2365
        %3220 = vmatprep.subr.bf16.mxu0 %v2371
        %3221 = vmatpush1.bf16.msra.mxu0 %v2370
        %3222 = vmatprep.subr.bf16.mxu0 %v2376
        %3223 = vmatpush1.bf16.msra.mxu0 %v2375
        %3224 = vmatprep.subr.bf16.mxu0 %v2381
        %3225 = vmatpush1.bf16.msra.mxu0 %v2380
        %3226 = vmatprep.subr.bf16.mxu0 %v2386
        %3227 = vmatpush1.bf16.msra.mxu0 %v2385
        %3228 = vmatprep.mubr.bf16.mxu0 %v775
        %3229 = vmatmul.mubr.bf16.gmra.mrb[0].mxu0 %v774
        %v3230 = vpop.f32.mrb[0].mxu0
        %v3231 = vadd.f32 %v3190, %v3230
        %v3232 = vpop.f32.mrb[0].mxu0
        %v3233 = vadd.f32 %v3192, %v3232
        %v3234 = vpop.f32.mrb[0].mxu0
        %v3235 = vpop.f32.mrb[0].mxu0
        %3236 = vdwg.mxu0
        %3237 = vmatprep.subr.bf16.mxu0 %v2391
        %3238 = vmatpush1.bf16.msra.mxu0 %v2390
        %3239 = vmatprep.subr.bf16.mxu0 %v2396
        %3240 = vmatpush1.bf16.msra.mxu0 %v2395
        %3241 = vmatprep.subr.bf16.mxu0 %v2401
        %3242 = vmatpush1.bf16.msra.mxu0 %v2400
        %3243 = vmatprep.subr.bf16.mxu0 %v2406
        %3244 = vmatpush1.bf16.msra.mxu0 %v2405
        %3245 = vmatprep.subr.bf16.mxu0 %v2411
        %3246 = vmatpush1.bf16.msra.mxu0 %v2410
        %3247 = vmatprep.subr.bf16.mxu0 %v2416
        %3248 = vmatpush1.bf16.msra.mxu0 %v2415
        %3249 = vmatprep.subr.bf16.mxu0 %v2421
        %3250 = vmatpush1.bf16.msra.mxu0 %v2420
        %3251 = vmatprep.subr.bf16.mxu0 %v2426
        %3252 = vmatpush1.bf16.msra.mxu0 %v2425
        %3253 = vmatprep.subr.bf16.mxu0 %v2431
        %3254 = vmatpush1.bf16.msra.mxu0 %v2430
        %3255 = vmatprep.subr.bf16.mxu0 %v2436
        %3256 = vmatpush1.bf16.msra.mxu0 %v2435
        %3257 = vmatprep.subr.bf16.mxu0 %v2441
        %3258 = vmatpush1.bf16.msra.mxu0 %v2440
        %3259 = vmatprep.subr.bf16.mxu0 %v2446
        %3260 = vmatpush1.bf16.msra.mxu0 %v2445
        %3261 = vmatprep.subr.bf16.mxu0 %v2451
        %3262 = vmatpush1.bf16.msra.mxu0 %v2450
        %3263 = vmatprep.subr.bf16.mxu0 %v2456
        %3264 = vmatpush1.bf16.msra.mxu0 %v2455
        %3265 = vmatprep.subr.bf16.mxu0 %v2461
        %3266 = vmatpush1.bf16.msra.mxu0 %v2460
        %3267 = vmatprep.subr.bf16.mxu0 %v2466
        %3268 = vmatpush1.bf16.msra.mxu0 %v2465
        %3269 = vmatprep.mubr.bf16.mxu0 %v777
        %3270 = vmatmul.mubr.bf16.gmra.mrb[0].mxu0 %v776
        %v3271 = vpop.f32.mrb[0].mxu0
        %v3272 = vadd.f32 %v3231, %v3271
        %v3273 = vpop.f32.mrb[0].mxu0
        %v3274 = vadd.f32 %v3233, %v3273
        %v3275 = vpop.f32.mrb[0].mxu0
        %v3276 = vpop.f32.mrb[0].mxu0
        %3277 = vdwg.mxu0
        %3278 = vmatprep.subr.bf16.mxu0 0
        %3279 = vmatpush1.bf16.msra.mxu0 %v2072
        %3280 = vmatprep.subr.bf16.mxu0 0
        %3281 = vmatpush1.bf16.msra.mxu0 %v2077
        %3282 = vmatprep.subr.bf16.mxu0 0
        %3283 = vmatpush1.bf16.msra.mxu0 %v2082
        %3284 = vmatprep.subr.bf16.mxu0 0
        %3285 = vmatpush1.bf16.msra.mxu0 %v2087
        %3286 = vmatprep.subr.bf16.mxu0 0
        %3287 = vmatpush1.bf16.msra.mxu0 %v2092
        %3288 = vmatprep.subr.bf16.mxu0 0
        %3289 = vmatpush1.bf16.msra.mxu0 %v2097
        %3290 = vmatprep.subr.bf16.mxu0 0
        %3291 = vmatpush1.bf16.msra.mxu0 %v2102
        %3292 = vmatprep.subr.bf16.mxu0 0
        %3293 = vmatpush1.bf16.msra.mxu0 %v2107
        %3294 = vmatprep.subr.bf16.mxu0 0
        %3295 = vmatpush1.bf16.msra.mxu0 %v2112
        %3296 = vmatprep.subr.bf16.mxu0 0
        %3297 = vmatpush1.bf16.msra.mxu0 %v2117
        %3298 = vmatprep.subr.bf16.mxu0 0
        %3299 = vmatpush1.bf16.msra.mxu0 %v2122
        %3300 = vmatprep.subr.bf16.mxu0 0
        %3301 = vmatpush1.bf16.msra.mxu0 %v2127
        %3302 = vmatprep.subr.bf16.mxu0 0
        %3303 = vmatpush1.bf16.msra.mxu0 %v2132
        %3304 = vmatprep.subr.bf16.mxu0 0
        %3305 = vmatpush1.bf16.msra.mxu0 %v2137
        %3306 = vmatprep.subr.bf16.mxu0 0
        %3307 = vmatpush1.bf16.msra.mxu0 %v2142
        %3308 = vmatprep.subr.bf16.mxu0 0
        %3309 = vmatpush1.bf16.msra.mxu0 %v2147
        %3310 = vmatprep.mubr.bf16.mxu0 %v769
        %3311 = vmatmul.mubr.bf16.gmra.mrb[0].mxu0 %v768
        %v3312 = vpop.f32.mrb[0].mxu0
        %v3313 = vadd.f32 %v747, %v3312
        %v3314 = vpop.f32.mrb[0].mxu0
        %v3315 = vpop.f32.mrb[0].mxu0
        %v3316 = vpop.f32.mrb[0].mxu0
        %3317 = vdwg.mxu0
        %3318 = vmatprep.subr.bf16.mxu0 0
        %3319 = vmatpush1.bf16.msra.mxu0 %v2152
        %3320 = vmatprep.subr.bf16.mxu0 0
        %3321 = vmatpush1.bf16.msra.mxu0 %v2157
        %3322 = vmatprep.subr.bf16.mxu0 0
        %3323 = vmatpush1.bf16.msra.mxu0 %v2162
        %3324 = vmatprep.subr.bf16.mxu0 0
        %3325 = vmatpush1.bf16.msra.mxu0 %v2167
        %3326 = vmatprep.subr.bf16.mxu0 0
        %3327 = vmatpush1.bf16.msra.mxu0 %v2172
        %3328 = vmatprep.subr.bf16.mxu0 0
        %3329 = vmatpush1.bf16.msra.mxu0 %v2177
        %3330 = vmatprep.subr.bf16.mxu0 0
        %3331 = vmatpush1.bf16.msra.mxu0 %v2182
        %3332 = vmatprep.subr.bf16.mxu0 0
        %3333 = vmatpush1.bf16.msra.mxu0 %v2187
        %3334 = vmatprep.subr.bf16.mxu0 0
        %3335 = vmatpush1.bf16.msra.mxu0 %v2192
        %3336 = vmatprep.subr.bf16.mxu0 0
        %3337 = vmatpush1.bf16.msra.mxu0 %v2197
        %3338 = vmatprep.subr.bf16.mxu0 0
        %3339 = vmatpush1.bf16.msra.mxu0 %v2202
        %3340 = vmatprep.subr.bf16.mxu0 0
        %3341 = vmatpush1.bf16.msra.mxu0 %v2207
        %3342 = vmatprep.subr.bf16.mxu0 0
        %3343 = vmatpush1.bf16.msra.mxu0 %v2212
        %3344 = vmatprep.subr.bf16.mxu0 0
        %3345 = vmatpush1.bf16.msra.mxu0 %v2217
        %3346 = vmatprep.subr.bf16.mxu0 0
        %3347 = vmatpush1.bf16.msra.mxu0 %v2222
        %3348 = vmatprep.subr.bf16.mxu0 0
        %3349 = vmatpush1.bf16.msra.mxu0 %v2227
        %3350 = vmatprep.mubr.bf16.mxu0 %v771
        %3351 = vmatmul.mubr.bf16.gmra.mrb[0].mxu0 %v770
        %v3352 = vpop.f32.mrb[0].mxu0
        %v3353 = vadd.f32 %v3313, %v3352
        %v3354 = vpop.f32.mrb[0].mxu0
        %v3355 = vpop.f32.mrb[0].mxu0
        %v3356 = vpop.f32.mrb[0].mxu0
        %3357 = vdwg.mxu0
        %3358 = vmatprep.subr.bf16.mxu0 0
        %3359 = vmatpush1.bf16.msra.mxu0 %v2232
        %3360 = vmatprep.subr.bf16.mxu0 0
        %3361 = vmatpush1.bf16.msra.mxu0 %v2237
        %3362 = vmatprep.subr.bf16.mxu0 0
        %3363 = vmatpush1.bf16.msra.mxu0 %v2242
        %3364 = vmatprep.subr.bf16.mxu0 0
        %3365 = vmatpush1.bf16.msra.mxu0 %v2247
        %3366 = vmatprep.subr.bf16.mxu0 0
        %3367 = vmatpush1.bf16.msra.mxu0 %v2252
        %3368 = vmatprep.subr.bf16.mxu0 0
        %3369 = vmatpush1.bf16.msra.mxu0 %v2257
        %3370 = vmatprep.subr.bf16.mxu0 0
        %3371 = vmatpush1.bf16.msra.mxu0 %v2262
        %3372 = vmatprep.subr.bf16.mxu0 0
        %3373 = vmatpush1.bf16.msra.mxu0 %v2267
        %3374 = vmatprep.subr.bf16.mxu0 0
        %3375 = vmatpush1.bf16.msra.mxu0 %v2272
        %3376 = vmatprep.subr.bf16.mxu0 0
        %3377 = vmatpush1.bf16.msra.mxu0 %v2277
        %3378 = vmatprep.subr.bf16.mxu0 0
        %3379 = vmatpush1.bf16.msra.mxu0 %v2282
        %3380 = vmatprep.subr.bf16.mxu0 0
        %3381 = vmatpush1.bf16.msra.mxu0 %v2287
        %3382 = vmatprep.subr.bf16.mxu0 0
        %3383 = vmatpush1.bf16.msra.mxu0 %v2292
        %3384 = vmatprep.subr.bf16.mxu0 0
        %3385 = vmatpush1.bf16.msra.mxu0 %v2297
        %3386 = vmatprep.subr.bf16.mxu0 0
        %3387 = vmatpush1.bf16.msra.mxu0 %v2302
        %3388 = vmatprep.subr.bf16.mxu0 0
        %3389 = vmatpush1.bf16.msra.mxu0 %v2307
        %3390 = vmatprep.mubr.bf16.mxu0 %v773
        %3391 = vmatmul.mubr.bf16.gmra.mrb[0].mxu0 %v772
        %v3392 = vpop.f32.mrb[0].mxu0
        %v3393 = vadd.f32 %v3353, %v3392
        %v3394 = vpop.f32.mrb[0].mxu0
        %v3395 = vpop.f32.mrb[0].mxu0
        %v3396 = vpop.f32.mrb[0].mxu0
        %3397 = vdwg.mxu0
        %3398 = vmatprep.subr.bf16.mxu0 0
        %3399 = vmatpush1.bf16.msra.mxu0 %v2312
        %3400 = vmatprep.subr.bf16.mxu0 0
        %3401 = vmatpush1.bf16.msra.mxu0 %v2317
        %3402 = vmatprep.subr.bf16.mxu0 0
        %3403 = vmatpush1.bf16.msra.mxu0 %v2322
        %3404 = vmatprep.subr.bf16.mxu0 0
        %3405 = vmatpush1.bf16.msra.mxu0 %v2327
        %3406 = vmatprep.subr.bf16.mxu0 0
        %3407 = vmatpush1.bf16.msra.mxu0 %v2332
        %3408 = vmatprep.subr.bf16.mxu0 0
        %3409 = vmatpush1.bf16.msra.mxu0 %v2337
        %3410 = vmatprep.subr.bf16.mxu0 0
        %3411 = vmatpush1.bf16.msra.mxu0 %v2342
        %3412 = vmatprep.subr.bf16.mxu0 0
        %3413 = vmatpush1.bf16.msra.mxu0 %v2347
        %3414 = vmatprep.subr.bf16.mxu0 0
        %3415 = vmatpush1.bf16.msra.mxu0 %v2352
        %3416 = vmatprep.subr.bf16.mxu0 0
        %3417 = vmatpush1.bf16.msra.mxu0 %v2357
        %3418 = vmatprep.subr.bf16.mxu0 0
        %3419 = vmatpush1.bf16.msra.mxu0 %v2362
        %3420 = vmatprep.subr.bf16.mxu0 0
        %3421 = vmatpush1.bf16.msra.mxu0 %v2367
        %3422 = vmatprep.subr.bf16.mxu0 0
        %3423 = vmatpush1.bf16.msra.mxu0 %v2372
        %3424 = vmatprep.subr.bf16.mxu0 0
        %3425 = vmatpush1.bf16.msra.mxu0 %v2377
        %3426 = vmatprep.subr.bf16.mxu0 0
        %3427 = vmatpush1.bf16.msra.mxu0 %v2382
        %3428 = vmatprep.subr.bf16.mxu0 0
        %3429 = vmatpush1.bf16.msra.mxu0 %v2387
        %3430 = vmatprep.mubr.bf16.mxu0 %v775
        %3431 = vmatmul.mubr.bf16.gmra.mrb[0].mxu0 %v774
        %v3432 = vpop.f32.mrb[0].mxu0
        %v3433 = vadd.f32 %v3393, %v3432
        %v3434 = vpop.f32.mrb[0].mxu0
        %v3435 = vpop.f32.mrb[0].mxu0
        %v3436 = vpop.f32.mrb[0].mxu0
        %3437 = vdwg.mxu0
        %3438 = vmatprep.subr.bf16.mxu0 0
        %3439 = vmatpush1.bf16.msra.mxu0 %v2392
        %3440 = vmatprep.subr.bf16.mxu0 0
        %3441 = vmatpush1.bf16.msra.mxu0 %v2397
        %3442 = vmatprep.subr.bf16.mxu0 0
        %3443 = vmatpush1.bf16.msra.mxu0 %v2402
        %3444 = vmatprep.subr.bf16.mxu0 0
        %3445 = vmatpush1.bf16.msra.mxu0 %v2407
        %3446 = vmatprep.subr.bf16.mxu0 0
        %3447 = vmatpush1.bf16.msra.mxu0 %v2412
        %3448 = vmatprep.subr.bf16.mxu0 0
        %3449 = vmatpush1.bf16.msra.mxu0 %v2417
        %3450 = vmatprep.subr.bf16.mxu0 0
        %3451 = vmatpush1.bf16.msra.mxu0 %v2422
        %3452 = vmatprep.subr.bf16.mxu0 0
        %3453 = vmatpush1.bf16.msra.mxu0 %v2427
        %3454 = vmatprep.subr.bf16.mxu0 0
        %3455 = vmatpush1.bf16.msra.mxu0 %v2432
        %3456 = vmatprep.subr.bf16.mxu0 0
        %3457 = vmatpush1.bf16.msra.mxu0 %v2437
        %3458 = vmatprep.subr.bf16.mxu0 0
        %3459 = vmatpush1.bf16.msra.mxu0 %v2442
        %3460 = vmatprep.subr.bf16.mxu0 0
        %3461 = vmatpush1.bf16.msra.mxu0 %v2447
        %3462 = vmatprep.subr.bf16.mxu0 0
        %3463 = vmatpush1.bf16.msra.mxu0 %v2452
        %3464 = vmatprep.subr.bf16.mxu0 0
        %3465 = vmatpush1.bf16.msra.mxu0 %v2457
        %3466 = vmatprep.subr.bf16.mxu0 0
        %3467 = vmatpush1.bf16.msra.mxu0 %v2462
        %3468 = vmatprep.subr.bf16.mxu0 0
        %3469 = vmatpush1.bf16.msra.mxu0 %v2467
        %3470 = vmatprep.mubr.bf16.mxu0 %v777
        %3471 = vmatmul.mubr.bf16.gmra.mrb[0].mxu0 %v776
        %v3472 = vpop.f32.mrb[0].mxu0
        %v3473 = vadd.f32 %v3433, %v3472
        %v3474 = vpop.f32.mrb[0].mxu0
        %v3475 = vpop.f32.mrb[0].mxu0
        %v3476 = vpop.f32.mrb[0].mxu0
        %3477 = vdwg.mxu0
        %3478 = vst [vmem:[%s236] sm:$0xff] %v3067
        %3479 = vst [vmem:[%s236 + $0x8] sm:$0xff] %v3069
        %3480 = vst [vmem:[%s236 + $0x10] sm:$0xff] %v3272
        %3481 = vst [vmem:[%s236 + $0x18] sm:$0xff] %v3274
        %3482 = vst [vmem:[%s236 + $0x20] sm:$0xff] %v3473
        %s3483 = sand.u32 %s102, 1
        %s3484 = scalar_lea.sflag [#allocation4], %s3483
        %s3485 = sand.u32 %s102, 1
        %s3486 = smul.addr %s3485, 40
        %s3487 = scalar_lea.vmem [#allocation8], %s3486
        // Predicated region
        $region45: #{tpu_custom_call.1} parent=31 // pred_check
          %p3488 = pneg %p112
        $region46: #{tpu_custom_call.1} parent=31 // pred_check_branch
          %3490 = sbr.rel (%p3488) target = $region48
        $region47: #{tpu_custom_call.1} parent=31 // pred_region
          %s3491 = smul.u32 5, %s21
          %s3493 = ssub.s32 640, 640
          %3494 = vsyncadd %s3484, %s3493
          %s3495 = smul.addr %s3491, 128
          %s3496 = scalar_lea.hbm %s3, %s3495
          %s3498 = sshll.u32 %s3487, 4
          %s3499 = int_to_ptr.vmem [resolvable:$true] %s3498
          %3501 = dma.vmem_to_hbm [thread:$0]  %s3499, 640, %s3496, %s3484
        $region48: #{tpu_custom_call.1} parent=31 // pred_fallthru
          _
      $region32: #{tpu_custom_call.1} parent=5 // pred_fallthru
        _
      %p3502 = scmp.le.s32.totalorder 2, %s16
      // Predicated region
      $region49: #{tpu_custom_call.1} parent=5 // pred_check
        %p3503 = pneg %p3502
      $region50: #{tpu_custom_call.1} parent=5 // pred_check_branch
        %3505 = sbr.rel (%p3503) target = $region52
      $region51: #{tpu_custom_call.1} parent=5 // pred_region
        %s3506 = ssub.s32 %s16, 2
        // Predicated region
        $region53: #{tpu_custom_call.1} parent=51 // pred_check
          %p3507 = pneg %p118
        $region54: #{tpu_custom_call.1} parent=51 // pred_check_branch
          %3509 = sbr.rel (%p3507) target = $region56
        $region55: #{tpu_custom_call.1} parent=51 // pred_region
          %s3510 = sand.u32 %s103, 1
          %s3511 = scalar_lea.sflag [#allocation4], %s3510
          %s3512 = sand.u32 %s103, 1
          %s3513 = smul.addr %s3512, 40
          %s3514 = scalar_lea.vmem [#allocation8], %s3513
          %3515 = dma.done %s3511, 640
        $region56: #{tpu_custom_call.1} parent=51 // pred_fallthru
          _
      $region52: #{tpu_custom_call.1} parent=5 // pred_fallthru
        _
    $region6: #{tpu_custom_call.1} parent=1 // loop_footer
      %s20 = sadd.s32 1, %s16
    $region7: #{tpu_custom_call.1} parent=1 // loop_footer_branch
      %15 = sbr.rel target = $region3
    $region8: #{tpu_custom_call.1} parent=1 // loop_exit
      _
    %3516 = vsyncpa [#allocation3], 1
    %s3517 = scalar_lea.sflag [#allocation3], 1
    %3518 = vsyncpa %s3517, 1
    %3519 = vsyncpa [#allocation6], 1
    %s3520 = scalar_lea.sflag [#allocation6], 1
    %3521 = vsyncpa %s3520, 1
    %3522 = vsyncpa [#allocation4], 1
    %s3523 = scalar_lea.sflag [#allocation4], 1
    %3524 = vsyncpa %s3523, 1

</llo_original>
